<compile_context>
chip_gen: v7x
topology: tpu7x:2x2x1
jax: 0.10.0
libtpu: 0.0.40
codegen_flags: <defaults>
</compile_context>

<pallas_src>
import functools

import jax
import jax.numpy as jnp
import numpy as np
from jax.experimental import pallas as pl
from jax.experimental.pallas import tpu as pltpu


# ----------------------------------------------------------------------------
# Fused encoder kernel: four chained matmuls, ReLU/SELU between conv layers.
#   x_ref  : (block_b, Cin*H*W)   f32
#   wN_ref : dense conv matrices  (f32 or bf16), bN_ref : (1, HW*CoutN) f32
#   wh_ref : fused + lane-padded head (F, 128), bh_ref : (1, 128) f32
#   out_ref: (block_b, 128)       f32   (cols [2L:128] are zero padding)
# ----------------------------------------------------------------------------
def _encoder_kernel(x_ref, w1_ref, b1_ref, w2_ref, b2_ref, w3_ref, b3_ref,
                    wh_ref, bh_ref, out_ref, *, activation):
    def act(v):
        if activation == "relu":
            return jnp.maximum(v, 0.0)
        return jax.nn.selu(v)  # 'selu' path (not exercised in the test below)

    def dense(h, w_ref, b_ref):
        # Cast the activation operand to the (possibly bf16) weight dtype only
        # at the MXU boundary; accumulate in f32; bias add stays f32 on VPU.
        y = jnp.dot(h.astype(w_ref.dtype), w_ref[...],
                    preferred_element_type=jnp.float32)
        return y + b_ref[...]

    h = x_ref[...].astype(jnp.float32)
    h = act(dense(h, w1_ref, b1_ref))          # conv1 + activation
    h = act(dense(h, w2_ref, b2_ref))          # conv2 + activation
    h = act(dense(h, w3_ref, b3_ref))          # conv3 + activation
    out_ref[...] = dense(h, wh_ref, bh_ref)    # fused fc_mu | fc_logvar (padded)


# ----------------------------------------------------------------------------
# One-time, host-side parameter preparation (hoisted out of the forward path).
# ----------------------------------------------------------------------------
def _conv_matrix(w, b, h_in, w_in, stride, padding):
    """Dense conv-as-matmul. Rows/cols are in NCHW (c, h, w) flatten order, so
    chained layers compose and the final layer matches PyTorch's .view(B, -1)."""
    w = np.asarray(w, np.float32)
    cout, cin, k, _ = w.shape
    h_out = (h_in + 2 * padding - k) // stride + 1
    w_out = (w_in + 2 * padding - k) // stride + 1
    m = np.zeros((cin * h_in * w_in, cout * h_out * w_out), np.float32)
    ho = np.arange(h_out)
    wo = np.arange(w_out)
    for kh in range(k):
        hi = ho * stride + kh - padding
        hv = (hi >= 0) & (hi < h_in)
        for kw in range(k):
            wi = wo * stride + kw - padding
            wv = (wi >= 0) & (wi < w_in)
            in_idx = (hi[hv][:, None] * w_in + wi[wv][None, :]).ravel()
            out_idx = (ho[hv][:, None] * w_out + wo[wv][None, :]).ravel()
            for ci in range(cin):
                for co in range(cout):
                    m[ci * h_in * w_in + in_idx,
                      co * h_out * w_out + out_idx] += w[co, ci, kh, kw]
    bias_flat = np.repeat(np.asarray(b, np.float32), h_out * w_out)
    return m, bias_flat, h_out, w_out


def prepare_params(params, *, in_hw, stride, padding,
                   compute_dtype=jnp.float32):
    h, w = in_hw
    m1, b1, h, w = _conv_matrix(params["w1"], params["b1"], h, w, stride, padding)
    m2, b2, h, w = _conv_matrix(params["w2"], params["b2"], h, w, stride, padding)
    m3, b3, h, w = _conv_matrix(params["w3"], params["b3"], h, w, stride, padding)

    feat = m3.shape[1]
    assert params["w_mu"].shape[1] == feat, "fc in_features != conv3 output size"
    latent = params["w_mu"].shape[0]
    out_pad = ((2 * latent + 127) // 128) * 128      # lane-dense output columns

    wh = np.zeros((feat, out_pad), np.float32)       # [ W_mu^T | W_logvar^T | 0 ]
    wh[:, :latent] = np.asarray(params["w_mu"], np.float32).T
    wh[:, latent:2 * latent] = np.asarray(params["w_logvar"], np.float32).T
    bh = np.zeros((out_pad,), np.float32)
    bh[:latent] = np.asarray(params["b_mu"], np.float32)
    bh[latent:2 * latent] = np.asarray(params["b_logvar"], np.float32)

    def w_(m):  # MXU operands: optionally bf16
        return jnp.asarray(m, compute_dtype)

    def b_(v):  # biases: added after f32 accumulation -> keep f32
        return jnp.asarray(v, jnp.float32).reshape(1, -1)

    return {"w1": w_(m1), "b1": b_(b1), "w2": w_(m2), "b2": b_(b2),
            "w3": w_(m3), "b3": b_(b3), "wh": w_(wh), "bh": b_(bh)}


# ----------------------------------------------------------------------------
# ConvEncoder forward: one fused pallas_call.
# ----------------------------------------------------------------------------
def conv_encoder_forward(x_nchw, prep, *, latent_dim, activation="relu",
                         block_b=None):
    B = x_nchw.shape[0]
    f0 = prep["w1"].shape[0]
    out_cols = prep["wh"].shape[1]
    # NCHW (c,h,w) flatten -- contiguous reshape, no transpose / relayout.
    x_flat = x_nchw.reshape(B, f0).astype(jnp.float32)

    if block_b is None:
        block_b = B
    assert B % block_b == 0, "block_b must divide the batch size"

    kern = functools.partial(_encoder_kernel, activation=activation)
    weights = (prep["w1"], prep["b1"], prep["w2"], prep["b2"],
               prep["w3"], prep["b3"], prep["wh"], prep["bh"])

    def resident(a):  # full-array block, same block index every grid step
        return pl.BlockSpec(a.shape, lambda i, nd=a.ndim: (0,) * nd)

    out = pl.pallas_call(
        kern,
        out_shape=jax.ShapeDtypeStruct((B, out_cols), jnp.float32),
        grid_spec=pltpu.PrefetchScalarGridSpec(
            num_scalar_prefetch=0,
            grid=(B // block_b,),                     # batch row-blocks
            in_specs=[pl.BlockSpec((block_b, f0), lambda i: (i, 0))]
                     + [resident(a) for a in weights],
            out_specs=pl.BlockSpec((block_b, out_cols), lambda i: (i, 0)),
        ),
        compiler_params=pltpu.CompilerParams(
            dimension_semantics=("parallel",),        # splits across v7x TCs at scale
            vmem_limit_bytes=32 * 1024 * 1024),
    )(x_flat, *weights)

    return out[:, :latent_dim], out[:, latent_dim:2 * latent_dim]


# ----------------------------------------------------------------------------
# Pure-JAX reference (NCHW, PyTorch conventions) for verification.
# ----------------------------------------------------------------------------
def reference_forward(x_nchw, params, *, stride, padding):
    def conv(x, w, b):
        y = jax.lax.conv_general_dilated(
            x, w, window_strides=(stride, stride),
            padding=((padding, padding), (padding, padding)),
            dimension_numbers=("NCHW", "OIHW", "NCHW"))
        return jnp.maximum(y + b[None, :, None, None], 0.0)

    x = conv(x_nchw, params["w1"], params["b1"])
    x = conv(x, params["w2"], params["b2"])
    x = conv(x, params["w3"], params["b3"])
    x_flat = x.reshape(x.shape[0], -1)
    mu = x_flat @ params["w_mu"].T + params["b_mu"]
    lv = x_flat @ params["w_logvar"].T + params["b_logvar"]
    return mu, lv


# ----------------------------------------------------------------------------
# Deterministic parameter construction (PyTorch-style shapes).
# ----------------------------------------------------------------------------
def init_params(key, in_channels, hidden_channels, latent_dim, one_hot_rows,
                one_hot_cols, kernel_size):
    c1 = hidden_channels // 2
    c2 = hidden_channels
    c3 = hidden_channels * 2
    feat = c3 * one_hot_rows * one_hot_cols
    keys = jax.random.split(key, 10)

    def uni(k, shape, fan_in):
        bound = 1.0 / np.sqrt(fan_in)
        return jax.random.uniform(k, shape, jnp.float32, -bound, bound)

    K = kernel_size
    return {
        "w1": uni(keys[0], (c1, in_channels, K, K), in_channels * K * K),
        "b1": uni(keys[1], (c1,), in_channels * K * K),
        "w2": uni(keys[2], (c2, c1, K, K), c1 * K * K),
        "b2": uni(keys[3], (c2,), c1 * K * K),
        "w3": uni(keys[4], (c3, c2, K, K), c2 * K * K),
        "b3": uni(keys[5], (c3,), c2 * K * K),
        "w_mu": uni(keys[6], (latent_dim, feat), feat),
        "b_mu": uni(keys[7], (latent_dim,), feat),
        "w_logvar": uni(keys[8], (latent_dim, feat), feat),
        "b_logvar": uni(keys[9], (latent_dim,), feat),
    }


if __name__ == "__main__":
    # Config: in_channels=4, one_hot 8x8, hidden_channels=8, latent_dim=16,
    # kernel_size=3, stride=1, padding=1, activation='relu', dropout=None.
    B, Cin, Hh, Ww = 2, 4, 8, 8
    hidden_channels, latent_dim = 8, 16
    kernel_size, stride, padding = 3, 1, 1

    key = jax.random.PRNGKey(0)
    k_x, k_p = jax.random.split(key)
    params = init_params(k_p, Cin, hidden_channels, latent_dim, Hh, Ww, kernel_size)
    x = jax.random.normal(k_x, (B, Cin, Hh, Ww), jnp.float32)

    mu_ref, lv_ref = reference_forward(x, params, stride=stride, padding=padding)
    mu_ref, lv_ref = np.asarray(mu_ref), np.asarray(lv_ref)

    fwd = jax.jit(functools.partial(conv_encoder_forward,
                                    latent_dim=latent_dim, activation="relu"))

    # --- f32 weights: tight check of the conv-as-matmul lowering. -----------
    prep32 = prepare_params(params, in_hw=(Hh, Ww), stride=stride,
                            padding=padding, compute_dtype=jnp.float32)
    mu32, lv32 = fwd(x, prep32)
    jax.block_until_ready((mu32, lv32))
    np.testing.assert_allclose(np.asarray(mu32), mu_ref, rtol=1e-4, atol=1e-4)
    np.testing.assert_allclose(np.asarray(lv32), lv_ref, rtol=1e-4, atol=1e-4)

    # --- bf16 MXU operands (native rate on v6e/v7x), f32 accumulation. ------
    prep16 = prepare_params(params, in_hw=(Hh, Ww), stride=stride,
                            padding=padding, compute_dtype=jnp.bfloat16)
    mu16, lv16 = fwd(x, prep16)
    jax.block_until_ready((mu16, lv16))
    np.testing.assert_allclose(np.asarray(mu16), mu_ref, rtol=5e-2, atol=1e-2)
    np.testing.assert_allclose(np.asarray(lv16), lv_ref, rtol=5e-2, atol=1e-2)

    print("KERNEL_OK")
</pallas_src>

<mosaic_0001>
module attributes {stable_mosaic.version = 11 : i64} {
  func.func @_encoder_kernel(%arg0: i32, %arg1: memref<2x256xf32, #tpu.memory_space<vmem>>, %arg2: memref<256x256xf32, #tpu.memory_space<vmem>>, %arg3: memref<1x256xf32, #tpu.memory_space<vmem>>, %arg4: memref<256x512xf32, #tpu.memory_space<vmem>>, %arg5: memref<1x512xf32, #tpu.memory_space<vmem>>, %arg6: memref<512x1024xf32, #tpu.memory_space<vmem>>, %arg7: memref<1x1024xf32, #tpu.memory_space<vmem>>, %arg8: memref<1024x128xf32, #tpu.memory_space<vmem>>, %arg9: memref<1x128xf32, #tpu.memory_space<vmem>>, %arg10: memref<2x128xf32, #tpu.memory_space<vmem>>) attributes {dimension_semantics = [#tpu.dimension_semantics<parallel>], iteration_bounds = array<i64: 1>, scalar_prefetch = 0 : i64, scratch_operands = 0 : i64, tpu.core_type = #tpu.core_type<tc>, window_params = [{transform_indices = @transform_0, window_bounds = array<i64: 2, 256>}, {pipeline_mode = #tpu.pipeline_mode<synchronous>, transform_indices = @transform_1, window_bounds = array<i64: 256, 256>}, {pipeline_mode = #tpu.pipeline_mode<synchronous>, transform_indices = @transform_2, window_bounds = array<i64: 1, 256>}, {pipeline_mode = #tpu.pipeline_mode<synchronous>, transform_indices = @transform_3, window_bounds = array<i64: 256, 512>}, {pipeline_mode = #tpu.pipeline_mode<synchronous>, transform_indices = @transform_4, window_bounds = array<i64: 1, 512>}, {pipeline_mode = #tpu.pipeline_mode<synchronous>, transform_indices = @transform_5, window_bounds = array<i64: 512, 1024>}, {pipeline_mode = #tpu.pipeline_mode<synchronous>, transform_indices = @transform_6, window_bounds = array<i64: 1, 1024>}, {pipeline_mode = #tpu.pipeline_mode<synchronous>, transform_indices = @transform_7, window_bounds = array<i64: 1024, 128>}, {pipeline_mode = #tpu.pipeline_mode<synchronous>, transform_indices = @transform_8, window_bounds = array<i64: 1, 128>}, {transform_indices = @transform_9, window_bounds = array<i64: 2, 128>}]} {
    %c0 = arith.constant 0 : index
    %c0_0 = arith.constant 0 : index
    %0 = vector.load %arg1[%c0, %c0_0] : memref<2x256xf32, #tpu.memory_space<vmem>>, vector<2x256xf32>
    %c0_1 = arith.constant 0 : index
    %c0_2 = arith.constant 0 : index
    %1 = vector.load %arg2[%c0_1, %c0_2] : memref<256x256xf32, #tpu.memory_space<vmem>>, vector<256x256xf32>
    %cst = arith.constant dense<0.000000e+00> : vector<2x256xf32>
    %2 = tpu.matmul %0, %1, %cst {dimension_numbers = #tpu.dot_dimension_numbers<[1], [0], [0], [1], [0, 0, 1, 1], [], []>} : vector<2x256xf32>, vector<256x256xf32>, vector<2x256xf32> -> vector<2x256xf32>
    %c0_3 = arith.constant 0 : index
    %c0_4 = arith.constant 0 : index
    %3 = vector.load %arg3[%c0_3, %c0_4] : memref<1x256xf32, #tpu.memory_space<vmem>>, vector<1x256xf32>
    %4 = vector.broadcast %3 : vector<1x256xf32> to vector<2x256xf32>
    %5 = arith.addf %2, %4 : vector<2x256xf32>
    %cst_5 = arith.constant 0.000000e+00 : f32
    %6 = vector.broadcast %cst_5 : f32 to vector<2x256xf32>
    %7 = arith.maximumf %5, %6 : vector<2x256xf32>
    %c0_6 = arith.constant 0 : index
    %c0_7 = arith.constant 0 : index
    %8 = vector.load %arg4[%c0_6, %c0_7] : memref<256x512xf32, #tpu.memory_space<vmem>>, vector<256x512xf32>
    %cst_8 = arith.constant dense<0.000000e+00> : vector<2x512xf32>
    %9 = tpu.matmul %7, %8, %cst_8 {dimension_numbers = #tpu.dot_dimension_numbers<[1], [0], [0], [1], [0, 0, 1, 1], [], []>} : vector<2x256xf32>, vector<256x512xf32>, vector<2x512xf32> -> vector<2x512xf32>
    %c0_9 = arith.constant 0 : index
    %c0_10 = arith.constant 0 : index
    %10 = vector.load %arg5[%c0_9, %c0_10] : memref<1x512xf32, #tpu.memory_space<vmem>>, vector<1x512xf32>
    %11 = vector.broadcast %10 : vector<1x512xf32> to vector<2x512xf32>
    %12 = arith.addf %9, %11 : vector<2x512xf32>
    %cst_11 = arith.constant 0.000000e+00 : f32
    %13 = vector.broadcast %cst_11 : f32 to vector<2x512xf32>
    %14 = arith.maximumf %12, %13 : vector<2x512xf32>
    %c0_12 = arith.constant 0 : index
    %c0_13 = arith.constant 0 : index
    %15 = vector.load %arg6[%c0_12, %c0_13] : memref<512x1024xf32, #tpu.memory_space<vmem>>, vector<512x1024xf32>
    %cst_14 = arith.constant dense<0.000000e+00> : vector<2x1024xf32>
    %16 = tpu.matmul %14, %15, %cst_14 {dimension_numbers = #tpu.dot_dimension_numbers<[1], [0], [0], [1], [0, 0, 1, 1], [], []>} : vector<2x512xf32>, vector<512x1024xf32>, vector<2x1024xf32> -> vector<2x1024xf32>
    %c0_15 = arith.constant 0 : index
    %c0_16 = arith.constant 0 : index
    %17 = vector.load %arg7[%c0_15, %c0_16] : memref<1x1024xf32, #tpu.memory_space<vmem>>, vector<1x1024xf32>
    %18 = vector.broadcast %17 : vector<1x1024xf32> to vector<2x1024xf32>
    %19 = arith.addf %16, %18 : vector<2x1024xf32>
    %cst_17 = arith.constant 0.000000e+00 : f32
    %20 = vector.broadcast %cst_17 : f32 to vector<2x1024xf32>
    %21 = arith.maximumf %19, %20 : vector<2x1024xf32>
    %c0_18 = arith.constant 0 : index
    %c0_19 = arith.constant 0 : index
    %22 = vector.load %arg8[%c0_18, %c0_19] : memref<1024x128xf32, #tpu.memory_space<vmem>>, vector<1024x128xf32>
    %cst_20 = arith.constant dense<0.000000e+00> : vector<2x128xf32>
    %23 = tpu.matmul %21, %22, %cst_20 {dimension_numbers = #tpu.dot_dimension_numbers<[1], [0], [0], [1], [0, 0, 1, 1], [], []>} : vector<2x1024xf32>, vector<1024x128xf32>, vector<2x128xf32> -> vector<2x128xf32>
    %c0_21 = arith.constant 0 : index
    %c0_22 = arith.constant 0 : index
    %24 = vector.load %arg9[%c0_21, %c0_22] : memref<1x128xf32, #tpu.memory_space<vmem>>, vector<1x128xf32>
    %25 = vector.broadcast %24 : vector<1x128xf32> to vector<2x128xf32>
    %26 = arith.addf %23, %25 : vector<2x128xf32>
    %c0_23 = arith.constant 0 : index
    %c0_24 = arith.constant 0 : index
    %27 = vector.load %arg10[%c0_23, %c0_24] : memref<2x128xf32, #tpu.memory_space<vmem>>, vector<2x128xf32>
    tpu.vector_store %arg10[%c0_23, %c0_24], %26 {strides = array<i32>} : memref<2x128xf32, #tpu.memory_space<vmem>>, vector<2x128xf32>,
    return
  }
  func.func @transform_0(%arg0: i32) -> (i32, i32) {
    %c0_i32 = arith.constant 0 : i32
    %c0_i32_0 = arith.constant 0 : i32
    return %arg0, %c0_i32 : i32, i32
  }
  func.func @transform_1(%arg0: i32) -> (i32, i32) {
    %c0_i32 = arith.constant 0 : i32
    %c0_i32_0 = arith.constant 0 : i32
    %c0_i32_1 = arith.constant 0 : i32
    return %c0_i32, %c0_i32_0 : i32, i32
  }
  func.func @transform_2(%arg0: i32) -> (i32, i32) {
    %c0_i32 = arith.constant 0 : i32
    %c0_i32_0 = arith.constant 0 : i32
    %c0_i32_1 = arith.constant 0 : i32
    return %c0_i32, %c0_i32_0 : i32, i32
  }
  func.func @transform_3(%arg0: i32) -> (i32, i32) {
    %c0_i32 = arith.constant 0 : i32
    %c0_i32_0 = arith.constant 0 : i32
    %c0_i32_1 = arith.constant 0 : i32
    return %c0_i32, %c0_i32_0 : i32, i32
  }
  func.func @transform_4(%arg0: i32) -> (i32, i32) {
    %c0_i32 = arith.constant 0 : i32
    %c0_i32_0 = arith.constant 0 : i32
    %c0_i32_1 = arith.constant 0 : i32
    return %c0_i32, %c0_i32_0 : i32, i32
  }
  func.func @transform_5(%arg0: i32) -> (i32, i32) {
    %c0_i32 = arith.constant 0 : i32
    %c0_i32_0 = arith.constant 0 : i32
    %c0_i32_1 = arith.constant 0 : i32
    return %c0_i32, %c0_i32_0 : i32, i32
  }
  func.func @transform_6(%arg0: i32) -> (i32, i32) {
    %c0_i32 = arith.constant 0 : i32
    %c0_i32_0 = arith.constant 0 : i32
    %c0_i32_1 = arith.constant 0 : i32
    return %c0_i32, %c0_i32_0 : i32, i32
  }
  func.func @transform_7(%arg0: i32) -> (i32, i32) {
    %c0_i32 = arith.constant 0 : i32
    %c0_i32_0 = arith.constant 0 : i32
    %c0_i32_1 = arith.constant 0 : i32
    return %c0_i32, %c0_i32_0 : i32, i32
  }
  func.func @transform_8(%arg0: i32) -> (i32, i32) {
    %c0_i32 = arith.constant 0 : i32
    %c0_i32_0 = arith.constant 0 : i32
    %c0_i32_1 = arith.constant 0 : i32
    return %c0_i32, %c0_i32_0 : i32, i32
  }
  func.func @transform_9(%arg0: i32) -> (i32, i32) {
    %c0_i32 = arith.constant 0 : i32
    %c0_i32_0 = arith.constant 0 : i32
    return %arg0, %c0_i32 : i32, i32
  }
}

</mosaic_0001>

<llo_original>
// kernel: conv_encoder_forward.1
$region0: #{conv_encoder_forward.1}
  #allocation0 [shape = 'u32[]', space=smem, size = 0x4, offset = 0x4, fixed_abs, tag = 'smem constant byte address 0x4 - core index']
  #allocation1 [shape = 'u32[144,128]{1,0:T(1,128)}', space=vmem, size = 0x12000, scoped, tag = 'internal scratch']
  %s0 = inlined_call_operand.vmem [shape: f32[2,256], index: 0, kind: input, shape index: {}]
  %s1 = inlined_call_operand.hbm [shape: f32[256,256], index: 1, kind: input, shape index: {}]
  %s2 = inlined_call_operand.hbm [shape: f32[1,256], index: 2, kind: input, shape index: {}]
  %s3 = inlined_call_operand.hbm [shape: f32[256,512], index: 3, kind: input, shape index: {}]
  %s4 = inlined_call_operand.hbm [shape: f32[1,512], index: 4, kind: input, shape index: {}]
  %s5 = inlined_call_operand.hbm [shape: f32[512,1024], index: 5, kind: input, shape index: {}]
  %s6 = inlined_call_operand.hbm [shape: f32[1,1024], index: 6, kind: input, shape index: {}]
  %s7 = inlined_call_operand.hbm [shape: f32[1024,128], index: 7, kind: input, shape index: {}]
  %s8 = inlined_call_operand.hbm [shape: f32[1,128], index: 8, kind: input, shape index: {}]
  %s9 = inlined_call_operand.vmem [shape: f32[2,128], index: 9, kind: output, shape index: {}]
  %s10 = sld [smem:[#allocation0]]
  $region78: #{conv_encoder_forward.1} parent=0
    _
  %s12 = ssub.s32 1, %s10
  %s13 = scalar_select 0, %s12, %s10
  $region1: #{conv_encoder_forward.1} parent=0
    #allocation2 [shape = 'u8[262144]{0}', space=vmem, size = 0x40000, scoped, tag = 'input window, operand 1, single buffered']
    #allocation3 [shape = 's32[1]{0}', space=sflag, size = 0x4, scoped, tag = 'scoped memory for conv_encoder_forward.1']
    #allocation4 [shape = 'u8[1024]{0}', space=vmem, size = 0x400, scoped, tag = 'input window, operand 2, single buffered']
    #allocation5 [shape = 's32[1]{0}', space=sflag, size = 0x4, scoped, tag = 'scoped memory for conv_encoder_forward.1']
    #allocation6 [shape = 'u8[524288]{0}', space=vmem, size = 0x80000, scoped, tag = 'input window, operand 3, single buffered']
    #allocation7 [shape = 'u8[2048]{0}', space=vmem, size = 0x800, scoped, tag = 'input window, operand 4, single buffered']
    #allocation8 [shape = 's32[1]{0}', space=sflag, size = 0x4, scoped, tag = 'scoped memory for conv_encoder_forward.1']
    #allocation9 [shape = 'u8[2097152]{0}', space=vmem, size = 0x200000, scoped, tag = 'input window, operand 5, single buffered']
    #allocation10 [shape = 'u8[4096]{0}', space=vmem, size = 0x1000, scoped, tag = 'input window, operand 6, single buffered']
    #allocation11 [shape = 's32[1]{0}', space=sflag, size = 0x4, scoped, tag = 'scoped memory for conv_encoder_forward.1']
    #allocation12 [shape = 'u8[524288]{0}', space=vmem, size = 0x80000, scoped, tag = 'input window, operand 7, single buffered']
    #allocation13 [shape = 'u8[512]{0}', space=vmem, size = 0x400, scoped, tag = 'input window, operand 8, single buffered']
    #allocation14 [shape = 's32[1]{0}', space=sflag, size = 0x4, scoped, tag = 'scoped memory for conv_encoder_forward.1']
    %14 = vsyncpa [#allocation3], 0
    %15 = vsyncpa [#allocation5], 0
    %16 = vsyncpa [#allocation8], 0
    %17 = vsyncpa [#allocation11], 0
    %18 = vsyncpa [#allocation14], 0
    // Predicated region
    $region2: #{conv_encoder_forward.1} parent=1 // pred_check
      _
    $region3: #{conv_encoder_forward.1} parent=1 // pred_check_branch
      %20 = sbr.rel (0) target = $region5
    $region4: #{conv_encoder_forward.1} parent=1 // pred_region
      _
    $region5: #{conv_encoder_forward.1} parent=1 // pred_fallthru
      _
    // Predicated region
    $region6: #{conv_encoder_forward.1} parent=1 // pred_check
      _
    $region7: #{conv_encoder_forward.1} parent=1 // pred_check_branch
      %22 = sbr.rel (0) target = $region9
    $region8: #{conv_encoder_forward.1} parent=1 // pred_region
      %s24 = ssub.s32 8192, 8192
      %25 = vsyncadd [#allocation3], %s24
      %s26 = sshll.u32 [#allocation2], 4
      %s27 = int_to_ptr.vmem [resolvable:$true] %s26
      %32 = dma.hbm_to_vmem [thread:$0]  %s1, 8192, %s27, [#allocation3], 256, 256, 16
    $region9: #{conv_encoder_forward.1} parent=1 // pred_fallthru
      _
    // Predicated region
    $region10: #{conv_encoder_forward.1} parent=1 // pred_check
      _
    $region11: #{conv_encoder_forward.1} parent=1 // pred_check_branch
      %34 = sbr.rel (0) target = $region13
    $region12: #{conv_encoder_forward.1} parent=1 // pred_region
      %s36 = ssub.s32 32, 32
      %37 = vsyncadd [#allocation5], %s36
      %s39 = sshll.u32 [#allocation4], 4
      %s40 = int_to_ptr.vmem [resolvable:$true] %s39
      %42 = dma.hbm_to_vmem [thread:$0]  %s2, 32, %s40, [#allocation5]
    $region13: #{conv_encoder_forward.1} parent=1 // pred_fallthru
      _
    // Predicated region
    $region14: #{conv_encoder_forward.1} parent=1 // pred_check
      _
    $region15: #{conv_encoder_forward.1} parent=1 // pred_check_branch
      %44 = sbr.rel (0) target = $region17
    $region16: #{conv_encoder_forward.1} parent=1 // pred_region
      %s46 = ssub.s32 16384, 16384
      %47 = vsyncadd [#allocation5], %s46
      %s48 = sshll.u32 [#allocation6], 4
      %s49 = int_to_ptr.vmem [resolvable:$true] %s48
      %54 = dma.hbm_to_vmem [thread:$0]  %s3, 16384, %s49, [#allocation5], 512, 512, 32
    $region17: #{conv_encoder_forward.1} parent=1 // pred_fallthru
      _
    // Predicated region
    $region18: #{conv_encoder_forward.1} parent=1 // pred_check
      _
    $region19: #{conv_encoder_forward.1} parent=1 // pred_check_branch
      %56 = sbr.rel (0) target = $region21
    $region20: #{conv_encoder_forward.1} parent=1 // pred_region
      %s58 = ssub.s32 64, 64
      %59 = vsyncadd [#allocation8], %s58
      %s61 = sshll.u32 [#allocation7], 4
      %s62 = int_to_ptr.vmem [resolvable:$true] %s61
      %64 = dma.hbm_to_vmem [thread:$0]  %s4, 64, %s62, [#allocation8]
    $region21: #{conv_encoder_forward.1} parent=1 // pred_fallthru
      _
    // Predicated region
    $region22: #{conv_encoder_forward.1} parent=1 // pred_check
      _
    $region23: #{conv_encoder_forward.1} parent=1 // pred_check_branch
      %66 = sbr.rel (0) target = $region25
    $region24: #{conv_encoder_forward.1} parent=1 // pred_region
      %s68 = ssub.s32 65536, 65536
      %69 = vsyncadd [#allocation8], %s68
      %s70 = sshll.u32 [#allocation9], 4
      %s71 = int_to_ptr.vmem [resolvable:$true] %s70
      %76 = dma.hbm_to_vmem [thread:$0]  %s5, 65536, %s71, [#allocation8], 1024, 1024, 64
    $region25: #{conv_encoder_forward.1} parent=1 // pred_fallthru
      _
    // Predicated region
    $region26: #{conv_encoder_forward.1} parent=1 // pred_check
      _
    $region27: #{conv_encoder_forward.1} parent=1 // pred_check_branch
      %78 = sbr.rel (0) target = $region29
    $region28: #{conv_encoder_forward.1} parent=1 // pred_region
      %s80 = ssub.s32 128, 128
      %81 = vsyncadd [#allocation11], %s80
      %s83 = sshll.u32 [#allocation10], 4
      %s84 = int_to_ptr.vmem [resolvable:$true] %s83
      %86 = dma.hbm_to_vmem [thread:$0]  %s6, 128, %s84, [#allocation11]
    $region29: #{conv_encoder_forward.1} parent=1 // pred_fallthru
      _
    // Predicated region
    $region30: #{conv_encoder_forward.1} parent=1 // pred_check
      _
    $region31: #{conv_encoder_forward.1} parent=1 // pred_check_branch
      %88 = sbr.rel (0) target = $region33
    $region32: #{conv_encoder_forward.1} parent=1 // pred_region
      %s90 = ssub.s32 16384, 16384
      %91 = vsyncadd [#allocation11], %s90
      %s92 = sshll.u32 [#allocation12], 4
      %s93 = int_to_ptr.vmem [resolvable:$true] %s92
      %98 = dma.hbm_to_vmem [thread:$0]  %s7, 16384, %s93, [#allocation11], 128, 128, 8
    $region33: #{conv_encoder_forward.1} parent=1 // pred_fallthru
      _
    // Predicated region
    $region34: #{conv_encoder_forward.1} parent=1 // pred_check
      _
    $region35: #{conv_encoder_forward.1} parent=1 // pred_check_branch
      %100 = sbr.rel (0) target = $region37
    $region36: #{conv_encoder_forward.1} parent=1 // pred_region
      %s102 = ssub.s32 16, 16
      %103 = vsyncadd [#allocation14], %s102
      %s105 = sshll.u32 [#allocation13], 4
      %s106 = int_to_ptr.vmem [resolvable:$true] %s105
      %108 = dma.hbm_to_vmem [thread:$0]  %s8, 16, %s106, [#allocation14]
    $region37: #{conv_encoder_forward.1} parent=1 // pred_fallthru
      _
    // Predicated region
    $region38: #{conv_encoder_forward.1} parent=1 // pred_check
      _
    $region39: #{conv_encoder_forward.1} parent=1 // pred_check_branch
      %110 = sbr.rel (0) target = $region41
    $region40: #{conv_encoder_forward.1} parent=1 // pred_region
      %111 = dma.done [#allocation3], 8192
    $region41: #{conv_encoder_forward.1} parent=1 // pred_fallthru
      _
    // Predicated region
    $region42: #{conv_encoder_forward.1} parent=1 // pred_check
      _
    $region43: #{conv_encoder_forward.1} parent=1 // pred_check_branch
      %113 = sbr.rel (0) target = $region45
    $region44: #{conv_encoder_forward.1} parent=1 // pred_region
      %114 = dma.done [#allocation5], 32
    $region45: #{conv_encoder_forward.1} parent=1 // pred_fallthru
      _
    // Predicated region
    $region46: #{conv_encoder_forward.1} parent=1 // pred_check
      _
    $region47: #{conv_encoder_forward.1} parent=1 // pred_check_branch
      %116 = sbr.rel (0) target = $region49
    $region48: #{conv_encoder_forward.1} parent=1 // pred_region
      %117 = dma.done [#allocation5], 16384
    $region49: #{conv_encoder_forward.1} parent=1 // pred_fallthru
      _
    // Predicated region
    $region50: #{conv_encoder_forward.1} parent=1 // pred_check
      _
    $region51: #{conv_encoder_forward.1} parent=1 // pred_check_branch
      %119 = sbr.rel (0) target = $region53
    $region52: #{conv_encoder_forward.1} parent=1 // pred_region
      %120 = dma.done [#allocation8], 64
    $region53: #{conv_encoder_forward.1} parent=1 // pred_fallthru
      _
    // Predicated region
    $region54: #{conv_encoder_forward.1} parent=1 // pred_check
      _
    $region55: #{conv_encoder_forward.1} parent=1 // pred_check_branch
      %122 = sbr.rel (0) target = $region57
    $region56: #{conv_encoder_forward.1} parent=1 // pred_region
      %123 = dma.done [#allocation8], 65536
    $region57: #{conv_encoder_forward.1} parent=1 // pred_fallthru
      _
    // Predicated region
    $region58: #{conv_encoder_forward.1} parent=1 // pred_check
      _
    $region59: #{conv_encoder_forward.1} parent=1 // pred_check_branch
      %125 = sbr.rel (0) target = $region61
    $region60: #{conv_encoder_forward.1} parent=1 // pred_region
      %126 = dma.done [#allocation11], 128
    $region61: #{conv_encoder_forward.1} parent=1 // pred_fallthru
      _
    // Predicated region
    $region62: #{conv_encoder_forward.1} parent=1 // pred_check
      _
    $region63: #{conv_encoder_forward.1} parent=1 // pred_check_branch
      %128 = sbr.rel (0) target = $region65
    $region64: #{conv_encoder_forward.1} parent=1 // pred_region
      %129 = dma.done [#allocation11], 16384
    $region65: #{conv_encoder_forward.1} parent=1 // pred_fallthru
      _
    // Predicated region
    $region66: #{conv_encoder_forward.1} parent=1 // pred_check
      _
    $region67: #{conv_encoder_forward.1} parent=1 // pred_check_branch
      %131 = sbr.rel (0) target = $region69
    $region68: #{conv_encoder_forward.1} parent=1 // pred_region
      %132 = dma.done [#allocation14], 16
    $region69: #{conv_encoder_forward.1} parent=1 // pred_fallthru
      _
    %v133 = vld [vmem:[%s0] sm:$0xf]
    %v134 = vld [vmem:[#allocation2] sm:$0xff]
    %v135 = vld [vmem:[#allocation2 + $0x8] sm:$0xff]
    %v136 = vld [vmem:[#allocation2 + $0x10] sm:$0xff]
    %v137 = vld [vmem:[#allocation2 + $0x18] sm:$0xff]
    %v138 = vld [vmem:[#allocation2 + $0x20] sm:$0xff]
    %v139 = vld [vmem:[#allocation2 + $0x28] sm:$0xff]
    %v140 = vld [vmem:[#allocation2 + $0x30] sm:$0xff]
    %v141 = vld [vmem:[#allocation2 + $0x38] sm:$0xff]
    %v142 = vld [vmem:[#allocation2 + $0x40] sm:$0xff]
    %v143 = vld [vmem:[#allocation2 + $0x48] sm:$0xff]
    %v144 = vld [vmem:[#allocation2 + $0x50] sm:$0xff]
    %v145 = vld [vmem:[#allocation2 + $0x58] sm:$0xff]
    %v146 = vld [vmem:[#allocation2 + $0x60] sm:$0xff]
    %v147 = vld [vmem:[#allocation2 + $0x68] sm:$0xff]
    %v148 = vld [vmem:[#allocation2 + $0x70] sm:$0xff]
    %v149 = vld [vmem:[#allocation2 + $0x78] sm:$0xff]
    %v150 = vld [vmem:[#allocation2 + $0x80] sm:$0xff]
    %v151 = vld [vmem:[#allocation2 + $0x88] sm:$0xff]
    %v152 = vld [vmem:[#allocation2 + $0x90] sm:$0xff]
    %v153 = vld [vmem:[#allocation2 + $0x98] sm:$0xff]
    %v154 = vld [vmem:[#allocation2 + $0xa0] sm:$0xff]
    %v155 = vld [vmem:[#allocation2 + $0xa8] sm:$0xff]
    %v156 = vld [vmem:[#allocation2 + $0xb0] sm:$0xff]
    %v157 = vld [vmem:[#allocation2 + $0xb8] sm:$0xff]
    %v158 = vld [vmem:[#allocation2 + $0xc0] sm:$0xff]
    %v159 = vld [vmem:[#allocation2 + $0xc8] sm:$0xff]
    %v160 = vld [vmem:[#allocation2 + $0xd0] sm:$0xff]
    %v161 = vld [vmem:[#allocation2 + $0xd8] sm:$0xff]
    %v162 = vld [vmem:[#allocation2 + $0xe0] sm:$0xff]
    %v163 = vld [vmem:[#allocation2 + $0xe8] sm:$0xff]
    %v164 = vld [vmem:[#allocation2 + $0xf0] sm:$0xff]
    %v165 = vld [vmem:[#allocation2 + $0xf8] sm:$0xff]
    %v166 = vld [vmem:[#allocation2 + $0x100] sm:$0xff]
    %v167 = vld [vmem:[#allocation2 + $0x108] sm:$0xff]
    %v168 = vld [vmem:[#allocation2 + $0x110] sm:$0xff]
    %v169 = vld [vmem:[#allocation2 + $0x118] sm:$0xff]
    %v170 = vld [vmem:[#allocation2 + $0x120] sm:$0xff]
    %v171 = vld [vmem:[#allocation2 + $0x128] sm:$0xff]
    %v172 = vld [vmem:[#allocation2 + $0x130] sm:$0xff]
    %v173 = vld [vmem:[#allocation2 + $0x138] sm:$0xff]
    %v174 = vld [vmem:[#allocation2 + $0x140] sm:$0xff]
    %v175 = vld [vmem:[#allocation2 + $0x148] sm:$0xff]
    %v176 = vld [vmem:[#allocation2 + $0x150] sm:$0xff]
    %v177 = vld [vmem:[#allocation2 + $0x158] sm:$0xff]
    %v178 = vld [vmem:[#allocation2 + $0x160] sm:$0xff]
    %v179 = vld [vmem:[#allocation2 + $0x168] sm:$0xff]
    %v180 = vld [vmem:[#allocation2 + $0x170] sm:$0xff]
    %v181 = vld [vmem:[#allocation2 + $0x178] sm:$0xff]
    %v182 = vld [vmem:[#allocation2 + $0x180] sm:$0xff]
    %v183 = vld [vmem:[#allocation2 + $0x188] sm:$0xff]
    %v184 = vld [vmem:[#allocation2 + $0x190] sm:$0xff]
    %v185 = vld [vmem:[#allocation2 + $0x198] sm:$0xff]
    %v186 = vld [vmem:[#allocation2 + $0x1a0] sm:$0xff]
    %v187 = vld [vmem:[#allocation2 + $0x1a8] sm:$0xff]
    %v188 = vld [vmem:[#allocation2 + $0x1b0] sm:$0xff]
    %v189 = vld [vmem:[#allocation2 + $0x1b8] sm:$0xff]
    %v190 = vld [vmem:[#allocation2 + $0x1c0] sm:$0xff]
    %v191 = vld [vmem:[#allocation2 + $0x1c8] sm:$0xff]
    %v192 = vld [vmem:[#allocation2 + $0x1d0] sm:$0xff]
    %v193 = vld [vmem:[#allocation2 + $0x1d8] sm:$0xff]
    %v194 = vld [vmem:[#allocation2 + $0x1e0] sm:$0xff]
    %v195 = vld [vmem:[#allocation2 + $0x1e8] sm:$0xff]
    %v196 = vld [vmem:[#allocation2 + $0x1f0] sm:$0xff]
    %v197 = vld [vmem:[#allocation2 + $0x1f8] sm:$0xff]
    %v198 = vld [vmem:[#allocation4] sm:$0x3]
    %v200 = vlaneseq
    %v201 = vshrl.u32 %v200, 7
    %v202 = vsub.s32 0, %v201
    %v203 = vrot.slane %v198, %v202
    %v204 = vlaneseq
    %v205 = vshrl.u32 %v204, 7
    %v206 = vsub.s32 1, %v205
    %v207 = vrot.slane %v198, %v206
    %v212 = vunpack.c.l.s4 1983009808
    %v213 = vunpack.c.0.s8 %v212
    %v214 = vlaneseq
    %v215 = vshrl.u32 %v214, 7
    %v216 = vsub.s32 %v213, %v215
    %v217 = vrot.slane %v133, %v216
    %v218 = vcombine.high %v217, %v217
    %221 = vmatprep.subr.mxu0 %v135
    %222 = vmatpush1.msra.mxu0 %v134
    %223 = vmatprep.subr.mxu0 %v137
    %224 = vmatpush1.msra.mxu0 %v136
    %225 = vmatprep.subr.mxu0 %v139
    %226 = vmatpush1.msra.mxu0 %v138
    %227 = vmatprep.subr.mxu0 %v141
    %228 = vmatpush1.msra.mxu0 %v140
    %229 = vmatprep.subr.mxu0 %v143
    %230 = vmatpush1.msra.mxu0 %v142
    %231 = vmatprep.subr.mxu0 %v145
    %232 = vmatpush1.msra.mxu0 %v144
    %233 = vmatprep.subr.mxu0 %v147
    %234 = vmatpush1.msra.mxu0 %v146
    %235 = vmatprep.subr.mxu0 %v149
    %236 = vmatpush1.msra.mxu0 %v148
    %237 = vmatprep.subr.mxu0 %v151
    %238 = vmatpush1.msra.mxu0 %v150
    %239 = vmatprep.subr.mxu0 %v153
    %240 = vmatpush1.msra.mxu0 %v152
    %241 = vmatprep.subr.mxu0 %v155
    %242 = vmatpush1.msra.mxu0 %v154
    %243 = vmatprep.subr.mxu0 %v157
    %244 = vmatpush1.msra.mxu0 %v156
    %245 = vmatprep.subr.mxu0 %v159
    %246 = vmatpush1.msra.mxu0 %v158
    %247 = vmatprep.subr.mxu0 %v161
    %248 = vmatpush1.msra.mxu0 %v160
    %249 = vmatprep.subr.mxu0 %v163
    %250 = vmatpush1.msra.mxu0 %v162
    %251 = vmatprep.subr.mxu0 %v165
    %252 = vmatpush1.msra.mxu0 %v164
    %253 = vmatprep.subr.mxu0 %v167
    %254 = vmatpush1.msra.mxu0 %v166
    %255 = vmatprep.subr.mxu0 %v169
    %256 = vmatpush1.msra.mxu0 %v168
    %257 = vmatprep.subr.mxu0 %v171
    %258 = vmatpush1.msra.mxu0 %v170
    %259 = vmatprep.subr.mxu0 %v173
    %260 = vmatpush1.msra.mxu0 %v172
    %261 = vmatprep.subr.mxu0 %v175
    %262 = vmatpush1.msra.mxu0 %v174
    %263 = vmatprep.subr.mxu0 %v177
    %264 = vmatpush1.msra.mxu0 %v176
    %265 = vmatprep.subr.mxu0 %v179
    %266 = vmatpush1.msra.mxu0 %v178
    %267 = vmatprep.subr.mxu0 %v181
    %268 = vmatpush1.msra.mxu0 %v180
    %269 = vmatprep.subr.mxu0 %v183
    %270 = vmatpush1.msra.mxu0 %v182
    %271 = vmatprep.subr.mxu0 %v185
    %272 = vmatpush1.msra.mxu0 %v184
    %273 = vmatprep.subr.mxu0 %v187
    %274 = vmatpush1.msra.mxu0 %v186
    %275 = vmatprep.subr.mxu0 %v189
    %276 = vmatpush1.msra.mxu0 %v188
    %277 = vmatprep.subr.mxu0 %v191
    %278 = vmatpush1.msra.mxu0 %v190
    %279 = vmatprep.subr.mxu0 %v193
    %280 = vmatpush1.msra.mxu0 %v192
    %281 = vmatprep.subr.mxu0 %v195
    %282 = vmatpush1.msra.mxu0 %v194
    %283 = vmatprep.subr.mxu0 %v197
    %284 = vmatpush1.msra.mxu0 %v196
    %285 = vmatprep.mubr.f32.mxu0 %v218
    %286 = vmatmul.mubr.f32.gmra.mrb[0].mxu0 %v217
    %v287 = vpop.f32.mrb[0].mxu0
    %v288 = vadd.f32 %v203, %v287
    %v289 = vpop.f32.mrb[0].mxu0
    %v290 = vadd.f32 %v207, %v289
    %291 = vdwg.mxu0
    %v292 = vmax.f32 %v288, 0.0
    %v293 = vmax.f32 %v290, 0.0
    %v294 = vld [vmem:[#allocation6] sm:$0xff]
    %v295 = vld [vmem:[#allocation6 + $0x8] sm:$0xff]
    %v296 = vld [vmem:[#allocation6 + $0x10] sm:$0xff]
    %v297 = vld [vmem:[#allocation6 + $0x18] sm:$0xff]
    %v298 = vld [vmem:[#allocation6 + $0x20] sm:$0xff]
    %v299 = vld [vmem:[#allocation6 + $0x28] sm:$0xff]
    %v300 = vld [vmem:[#allocation6 + $0x30] sm:$0xff]
    %v301 = vld [vmem:[#allocation6 + $0x38] sm:$0xff]
    %v302 = vld [vmem:[#allocation6 + $0x40] sm:$0xff]
    %v303 = vld [vmem:[#allocation6 + $0x48] sm:$0xff]
    %v304 = vld [vmem:[#allocation6 + $0x50] sm:$0xff]
    %v305 = vld [vmem:[#allocation6 + $0x58] sm:$0xff]
    %v306 = vld [vmem:[#allocation6 + $0x60] sm:$0xff]
    %v307 = vld [vmem:[#allocation6 + $0x68] sm:$0xff]
    %v308 = vld [vmem:[#allocation6 + $0x70] sm:$0xff]
    %v309 = vld [vmem:[#allocation6 + $0x78] sm:$0xff]
    %v310 = vld [vmem:[#allocation6 + $0x80] sm:$0xff]
    %v311 = vld [vmem:[#allocation6 + $0x88] sm:$0xff]
    %v312 = vld [vmem:[#allocation6 + $0x90] sm:$0xff]
    %v313 = vld [vmem:[#allocation6 + $0x98] sm:$0xff]
    %v314 = vld [vmem:[#allocation6 + $0xa0] sm:$0xff]
    %v315 = vld [vmem:[#allocation6 + $0xa8] sm:$0xff]
    %v316 = vld [vmem:[#allocation6 + $0xb0] sm:$0xff]
    %v317 = vld [vmem:[#allocation6 + $0xb8] sm:$0xff]
    %v318 = vld [vmem:[#allocation6 + $0xc0] sm:$0xff]
    %v319 = vld [vmem:[#allocation6 + $0xc8] sm:$0xff]
    %v320 = vld [vmem:[#allocation6 + $0xd0] sm:$0xff]
    %v321 = vld [vmem:[#allocation6 + $0xd8] sm:$0xff]
    %v322 = vld [vmem:[#allocation6 + $0xe0] sm:$0xff]
    %v323 = vld [vmem:[#allocation6 + $0xe8] sm:$0xff]
    %v324 = vld [vmem:[#allocation6 + $0xf0] sm:$0xff]
    %v325 = vld [vmem:[#allocation6 + $0xf8] sm:$0xff]
    %v326 = vld [vmem:[#allocation6 + $0x100] sm:$0xff]
    %v327 = vld [vmem:[#allocation6 + $0x108] sm:$0xff]
    %v328 = vld [vmem:[#allocation6 + $0x110] sm:$0xff]
    %v329 = vld [vmem:[#allocation6 + $0x118] sm:$0xff]
    %v330 = vld [vmem:[#allocation6 + $0x120] sm:$0xff]
    %v331 = vld [vmem:[#allocation6 + $0x128] sm:$0xff]
    %v332 = vld [vmem:[#allocation6 + $0x130] sm:$0xff]
    %v333 = vld [vmem:[#allocation6 + $0x138] sm:$0xff]
    %v334 = vld [vmem:[#allocation6 + $0x140] sm:$0xff]
    %v335 = vld [vmem:[#allocation6 + $0x148] sm:$0xff]
    %v336 = vld [vmem:[#allocation6 + $0x150] sm:$0xff]
    %v337 = vld [vmem:[#allocation6 + $0x158] sm:$0xff]
    %v338 = vld [vmem:[#allocation6 + $0x160] sm:$0xff]
    %v339 = vld [vmem:[#allocation6 + $0x168] sm:$0xff]
    %v340 = vld [vmem:[#allocation6 + $0x170] sm:$0xff]
    %v341 = vld [vmem:[#allocation6 + $0x178] sm:$0xff]
    %v342 = vld [vmem:[#allocation6 + $0x180] sm:$0xff]
    %v343 = vld [vmem:[#allocation6 + $0x188] sm:$0xff]
    %v344 = vld [vmem:[#allocation6 + $0x190] sm:$0xff]
    %v345 = vld [vmem:[#allocation6 + $0x198] sm:$0xff]
    %v346 = vld [vmem:[#allocation6 + $0x1a0] sm:$0xff]
    %v347 = vld [vmem:[#allocation6 + $0x1a8] sm:$0xff]
    %v348 = vld [vmem:[#allocation6 + $0x1b0] sm:$0xff]
    %v349 = vld [vmem:[#allocation6 + $0x1b8] sm:$0xff]
    %v350 = vld [vmem:[#allocation6 + $0x1c0] sm:$0xff]
    %v351 = vld [vmem:[#allocation6 + $0x1c8] sm:$0xff]
    %v352 = vld [vmem:[#allocation6 + $0x1d0] sm:$0xff]
    %v353 = vld [vmem:[#allocation6 + $0x1d8] sm:$0xff]
    %v354 = vld [vmem:[#allocation6 + $0x1e0] sm:$0xff]
    %v355 = vld [vmem:[#allocation6 + $0x1e8] sm:$0xff]
    %v356 = vld [vmem:[#allocation6 + $0x1f0] sm:$0xff]
    %v357 = vld [vmem:[#allocation6 + $0x1f8] sm:$0xff]
    %v358 = vld [vmem:[#allocation6 + $0x200] sm:$0xff]
    %v359 = vld [vmem:[#allocation6 + $0x208] sm:$0xff]
    %v360 = vld [vmem:[#allocation6 + $0x210] sm:$0xff]
    %v361 = vld [vmem:[#allocation6 + $0x218] sm:$0xff]
    %v362 = vld [vmem:[#allocation6 + $0x220] sm:$0xff]
    %v363 = vld [vmem:[#allocation6 + $0x228] sm:$0xff]
    %v364 = vld [vmem:[#allocation6 + $0x230] sm:$0xff]
    %v365 = vld [vmem:[#allocation6 + $0x238] sm:$0xff]
    %v366 = vld [vmem:[#allocation6 + $0x240] sm:$0xff]
    %v367 = vld [vmem:[#allocation6 + $0x248] sm:$0xff]
    %v368 = vld [vmem:[#allocation6 + $0x250] sm:$0xff]
    %v369 = vld [vmem:[#allocation6 + $0x258] sm:$0xff]
    %v370 = vld [vmem:[#allocation6 + $0x260] sm:$0xff]
    %v371 = vld [vmem:[#allocation6 + $0x268] sm:$0xff]
    %v372 = vld [vmem:[#allocation6 + $0x270] sm:$0xff]
    %v373 = vld [vmem:[#allocation6 + $0x278] sm:$0xff]
    %v374 = vld [vmem:[#allocation6 + $0x280] sm:$0xff]
    %v375 = vld [vmem:[#allocation6 + $0x288] sm:$0xff]
    %v376 = vld [vmem:[#allocation6 + $0x290] sm:$0xff]
    %v377 = vld [vmem:[#allocation6 + $0x298] sm:$0xff]
    %v378 = vld [vmem:[#allocation6 + $0x2a0] sm:$0xff]
    %v379 = vld [vmem:[#allocation6 + $0x2a8] sm:$0xff]
    %v380 = vld [vmem:[#allocation6 + $0x2b0] sm:$0xff]
    %v381 = vld [vmem:[#allocation6 + $0x2b8] sm:$0xff]
    %v382 = vld [vmem:[#allocation6 + $0x2c0] sm:$0xff]
    %v383 = vld [vmem:[#allocation6 + $0x2c8] sm:$0xff]
    %v384 = vld [vmem:[#allocation6 + $0x2d0] sm:$0xff]
    %v385 = vld [vmem:[#allocation6 + $0x2d8] sm:$0xff]
    %v386 = vld [vmem:[#allocation6 + $0x2e0] sm:$0xff]
    %v387 = vld [vmem:[#allocation6 + $0x2e8] sm:$0xff]
    %v388 = vld [vmem:[#allocation6 + $0x2f0] sm:$0xff]
    %v389 = vld [vmem:[#allocation6 + $0x2f8] sm:$0xff]
    %v390 = vld [vmem:[#allocation6 + $0x300] sm:$0xff]
    %v391 = vld [vmem:[#allocation6 + $0x308] sm:$0xff]
    %v392 = vld [vmem:[#allocation6 + $0x310] sm:$0xff]
    %v393 = vld [vmem:[#allocation6 + $0x318] sm:$0xff]
    %v394 = vld [vmem:[#allocation6 + $0x320] sm:$0xff]
    %v395 = vld [vmem:[#allocation6 + $0x328] sm:$0xff]
    %v396 = vld [vmem:[#allocation6 + $0x330] sm:$0xff]
    %v397 = vld [vmem:[#allocation6 + $0x338] sm:$0xff]
    %v398 = vld [vmem:[#allocation6 + $0x340] sm:$0xff]
    %v399 = vld [vmem:[#allocation6 + $0x348] sm:$0xff]
    %v400 = vld [vmem:[#allocation6 + $0x350] sm:$0xff]
    %v401 = vld [vmem:[#allocation6 + $0x358] sm:$0xff]
    %v402 = vld [vmem:[#allocation6 + $0x360] sm:$0xff]
    %v403 = vld [vmem:[#allocation6 + $0x368] sm:$0xff]
    %v404 = vld [vmem:[#allocation6 + $0x370] sm:$0xff]
    %v405 = vld [vmem:[#allocation6 + $0x378] sm:$0xff]
    %v406 = vld [vmem:[#allocation6 + $0x380] sm:$0xff]
    %v407 = vld [vmem:[#allocation6 + $0x388] sm:$0xff]
    %v408 = vld [vmem:[#allocation6 + $0x390] sm:$0xff]
    %v409 = vld [vmem:[#allocation6 + $0x398] sm:$0xff]
    %v410 = vld [vmem:[#allocation6 + $0x3a0] sm:$0xff]
    %v411 = vld [vmem:[#allocation6 + $0x3a8] sm:$0xff]
    %v412 = vld [vmem:[#allocation6 + $0x3b0] sm:$0xff]
    %v413 = vld [vmem:[#allocation6 + $0x3b8] sm:$0xff]
    %v414 = vld [vmem:[#allocation6 + $0x3c0] sm:$0xff]
    %v415 = vld [vmem:[#allocation6 + $0x3c8] sm:$0xff]
    %v416 = vld [vmem:[#allocation6 + $0x3d0] sm:$0xff]
    %v417 = vld [vmem:[#allocation6 + $0x3d8] sm:$0xff]
    %v418 = vld [vmem:[#allocation6 + $0x3e0] sm:$0xff]
    %v419 = vld [vmem:[#allocation6 + $0x3e8] sm:$0xff]
    %v420 = vld [vmem:[#allocation6 + $0x3f0] sm:$0xff]
    %v421 = vld [vmem:[#allocation6 + $0x3f8] sm:$0xff]
    %v422 = vld [vmem:[#allocation7] sm:$0xf]
    %v424 = vlaneseq
    %v425 = vshrl.u32 %v424, 7
    %v426 = vsub.s32 0, %v425
    %v427 = vrot.slane %v422, %v426
    %v428 = vlaneseq
    %v429 = vshrl.u32 %v428, 7
    %v430 = vsub.s32 1, %v429
    %v431 = vrot.slane %v422, %v430
    %v432 = vlaneseq
    %v433 = vshrl.u32 %v432, 7
    %v434 = vsub.s32 2, %v433
    %v435 = vrot.slane %v422, %v434
    %v436 = vlaneseq
    %v437 = vshrl.u32 %v436, 7
    %v438 = vsub.s32 3, %v437
    %v439 = vrot.slane %v422, %v438
    %444 = vmatprep.subr.mxu0 %v295
    %445 = vmatpush1.msra.mxu0 %v294
    %446 = vmatprep.subr.mxu0 %v299
    %447 = vmatpush1.msra.mxu0 %v298
    %448 = vmatprep.subr.mxu0 %v303
    %449 = vmatpush1.msra.mxu0 %v302
    %450 = vmatprep.subr.mxu0 %v307
    %451 = vmatpush1.msra.mxu0 %v306
    %452 = vmatprep.subr.mxu0 %v311
    %453 = vmatpush1.msra.mxu0 %v310
    %454 = vmatprep.subr.mxu0 %v315
    %455 = vmatpush1.msra.mxu0 %v314
    %456 = vmatprep.subr.mxu0 %v319
    %457 = vmatpush1.msra.mxu0 %v318
    %458 = vmatprep.subr.mxu0 %v323
    %459 = vmatpush1.msra.mxu0 %v322
    %460 = vmatprep.subr.mxu0 %v327
    %461 = vmatpush1.msra.mxu0 %v326
    %462 = vmatprep.subr.mxu0 %v331
    %463 = vmatpush1.msra.mxu0 %v330
    %464 = vmatprep.subr.mxu0 %v335
    %465 = vmatpush1.msra.mxu0 %v334
    %466 = vmatprep.subr.mxu0 %v339
    %467 = vmatpush1.msra.mxu0 %v338
    %468 = vmatprep.subr.mxu0 %v343
    %469 = vmatpush1.msra.mxu0 %v342
    %470 = vmatprep.subr.mxu0 %v347
    %471 = vmatpush1.msra.mxu0 %v346
    %472 = vmatprep.subr.mxu0 %v351
    %473 = vmatpush1.msra.mxu0 %v350
    %474 = vmatprep.subr.mxu0 %v355
    %475 = vmatpush1.msra.mxu0 %v354
    %476 = vmatprep.subr.mxu0 %v359
    %477 = vmatpush1.msra.mxu0 %v358
    %478 = vmatprep.subr.mxu0 %v363
    %479 = vmatpush1.msra.mxu0 %v362
    %480 = vmatprep.subr.mxu0 %v367
    %481 = vmatpush1.msra.mxu0 %v366
    %482 = vmatprep.subr.mxu0 %v371
    %483 = vmatpush1.msra.mxu0 %v370
    %484 = vmatprep.subr.mxu0 %v375
    %485 = vmatpush1.msra.mxu0 %v374
    %486 = vmatprep.subr.mxu0 %v379
    %487 = vmatpush1.msra.mxu0 %v378
    %488 = vmatprep.subr.mxu0 %v383
    %489 = vmatpush1.msra.mxu0 %v382
    %490 = vmatprep.subr.mxu0 %v387
    %491 = vmatpush1.msra.mxu0 %v386
    %492 = vmatprep.subr.mxu0 %v391
    %493 = vmatpush1.msra.mxu0 %v390
    %494 = vmatprep.subr.mxu0 %v395
    %495 = vmatpush1.msra.mxu0 %v394
    %496 = vmatprep.subr.mxu0 %v399
    %497 = vmatpush1.msra.mxu0 %v398
    %498 = vmatprep.subr.mxu0 %v403
    %499 = vmatpush1.msra.mxu0 %v402
    %500 = vmatprep.subr.mxu0 %v407
    %501 = vmatpush1.msra.mxu0 %v406
    %502 = vmatprep.subr.mxu0 %v411
    %503 = vmatpush1.msra.mxu0 %v410
    %504 = vmatprep.subr.mxu0 %v415
    %505 = vmatpush1.msra.mxu0 %v414
    %506 = vmatprep.subr.mxu0 %v419
    %507 = vmatpush1.msra.mxu0 %v418
    %508 = vmatprep.mubr.f32.mxu0 %v293
    %509 = vmatmul.mubr.f32.gmra.mrb[0].mxu0 %v292
    %v510 = vpop.f32.mrb[0].mxu0
    %v511 = vadd.f32 %v427, %v510
    %v512 = vpop.f32.mrb[0].mxu0
    %v513 = vadd.f32 %v431, %v512
    %514 = vdwg.mxu0
    %515 = vmatprep.subr.mxu0 %v297
    %516 = vmatpush1.msra.mxu0 %v296
    %517 = vmatprep.subr.mxu0 %v301
    %518 = vmatpush1.msra.mxu0 %v300
    %519 = vmatprep.subr.mxu0 %v305
    %520 = vmatpush1.msra.mxu0 %v304
    %521 = vmatprep.subr.mxu0 %v309
    %522 = vmatpush1.msra.mxu0 %v308
    %523 = vmatprep.subr.mxu0 %v313
    %524 = vmatpush1.msra.mxu0 %v312
    %525 = vmatprep.subr.mxu0 %v317
    %526 = vmatpush1.msra.mxu0 %v316
    %527 = vmatprep.subr.mxu0 %v321
    %528 = vmatpush1.msra.mxu0 %v320
    %529 = vmatprep.subr.mxu0 %v325
    %530 = vmatpush1.msra.mxu0 %v324
    %531 = vmatprep.subr.mxu0 %v329
    %532 = vmatpush1.msra.mxu0 %v328
    %533 = vmatprep.subr.mxu0 %v333
    %534 = vmatpush1.msra.mxu0 %v332
    %535 = vmatprep.subr.mxu0 %v337
    %536 = vmatpush1.msra.mxu0 %v336
    %537 = vmatprep.subr.mxu0 %v341
    %538 = vmatpush1.msra.mxu0 %v340
    %539 = vmatprep.subr.mxu0 %v345
    %540 = vmatpush1.msra.mxu0 %v344
    %541 = vmatprep.subr.mxu0 %v349
    %542 = vmatpush1.msra.mxu0 %v348
    %543 = vmatprep.subr.mxu0 %v353
    %544 = vmatpush1.msra.mxu0 %v352
    %545 = vmatprep.subr.mxu0 %v357
    %546 = vmatpush1.msra.mxu0 %v356
    %547 = vmatprep.subr.mxu0 %v361
    %548 = vmatpush1.msra.mxu0 %v360
    %549 = vmatprep.subr.mxu0 %v365
    %550 = vmatpush1.msra.mxu0 %v364
    %551 = vmatprep.subr.mxu0 %v369
    %552 = vmatpush1.msra.mxu0 %v368
    %553 = vmatprep.subr.mxu0 %v373
    %554 = vmatpush1.msra.mxu0 %v372
    %555 = vmatprep.subr.mxu0 %v377
    %556 = vmatpush1.msra.mxu0 %v376
    %557 = vmatprep.subr.mxu0 %v381
    %558 = vmatpush1.msra.mxu0 %v380
    %559 = vmatprep.subr.mxu0 %v385
    %560 = vmatpush1.msra.mxu0 %v384
    %561 = vmatprep.subr.mxu0 %v389
    %562 = vmatpush1.msra.mxu0 %v388
    %563 = vmatprep.subr.mxu0 %v393
    %564 = vmatpush1.msra.mxu0 %v392
    %565 = vmatprep.subr.mxu0 %v397
    %566 = vmatpush1.msra.mxu0 %v396
    %567 = vmatprep.subr.mxu0 %v401
    %568 = vmatpush1.msra.mxu0 %v400
    %569 = vmatprep.subr.mxu0 %v405
    %570 = vmatpush1.msra.mxu0 %v404
    %571 = vmatprep.subr.mxu0 %v409
    %572 = vmatpush1.msra.mxu0 %v408
    %573 = vmatprep.subr.mxu0 %v413
    %574 = vmatpush1.msra.mxu0 %v412
    %575 = vmatprep.subr.mxu0 %v417
    %576 = vmatpush1.msra.mxu0 %v416
    %577 = vmatprep.subr.mxu0 %v421
    %578 = vmatpush1.msra.mxu0 %v420
    %579 = vmatprep.mubr.f32.mxu0 %v293
    %580 = vmatmul.mubr.f32.gmra.mrb[0].mxu0 %v292
    %v581 = vpop.f32.mrb[0].mxu0
    %v582 = vadd.f32 %v435, %v581
    %v583 = vpop.f32.mrb[0].mxu0
    %v584 = vadd.f32 %v439, %v583
    %585 = vdwg.mxu0
    %v586 = vmax.f32 %v511, 0.0
    %v587 = vmax.f32 %v513, 0.0
    %v588 = vmax.f32 %v582, 0.0
    %v589 = vmax.f32 %v584, 0.0
    %v590 = vld [vmem:[#allocation9] sm:$0xff]
    %v591 = vld [vmem:[#allocation9 + $0x8] sm:$0xff]
    %v592 = vld [vmem:[#allocation9 + $0x10] sm:$0xff]
    %v593 = vld [vmem:[#allocation9 + $0x18] sm:$0xff]
    %v594 = vld [vmem:[#allocation9 + $0x20] sm:$0xff]
    %v595 = vld [vmem:[#allocation9 + $0x28] sm:$0xff]
    %v596 = vld [vmem:[#allocation9 + $0x30] sm:$0xff]
    %v597 = vld [vmem:[#allocation9 + $0x38] sm:$0xff]
    %v598 = vld [vmem:[#allocation9 + $0x40] sm:$0xff]
    %v599 = vld [vmem:[#allocation9 + $0x48] sm:$0xff]
    %v600 = vld [vmem:[#allocation9 + $0x50] sm:$0xff]
    %v601 = vld [vmem:[#allocation9 + $0x58] sm:$0xff]
    %v602 = vld [vmem:[#allocation9 + $0x60] sm:$0xff]
    %v603 = vld [vmem:[#allocation9 + $0x68] sm:$0xff]
    %v604 = vld [vmem:[#allocation9 + $0x70] sm:$0xff]
    %v605 = vld [vmem:[#allocation9 + $0x78] sm:$0xff]
    %v606 = vld [vmem:[#allocation9 + $0x80] sm:$0xff]
    %v607 = vld [vmem:[#allocation9 + $0x88] sm:$0xff]
    %v608 = vld [vmem:[#allocation9 + $0x90] sm:$0xff]
    %v609 = vld [vmem:[#allocation9 + $0x98] sm:$0xff]
    %v610 = vld [vmem:[#allocation9 + $0xa0] sm:$0xff]
    %v611 = vld [vmem:[#allocation9 + $0xa8] sm:$0xff]
    %v612 = vld [vmem:[#allocation9 + $0xb0] sm:$0xff]
    %v613 = vld [vmem:[#allocation9 + $0xb8] sm:$0xff]
    %v614 = vld [vmem:[#allocation9 + $0xc0] sm:$0xff]
    %v615 = vld [vmem:[#allocation9 + $0xc8] sm:$0xff]
    %v616 = vld [vmem:[#allocation9 + $0xd0] sm:$0xff]
    %v617 = vld [vmem:[#allocation9 + $0xd8] sm:$0xff]
    %v618 = vld [vmem:[#allocation9 + $0xe0] sm:$0xff]
    %v619 = vld [vmem:[#allocation9 + $0xe8] sm:$0xff]
    %v620 = vld [vmem:[#allocation9 + $0xf0] sm:$0xff]
    %v621 = vld [vmem:[#allocation9 + $0xf8] sm:$0xff]
    %v622 = vld [vmem:[#allocation9 + $0x100] sm:$0xff]
    %v623 = vld [vmem:[#allocation9 + $0x108] sm:$0xff]
    %v624 = vld [vmem:[#allocation9 + $0x110] sm:$0xff]
    %v625 = vld [vmem:[#allocation9 + $0x118] sm:$0xff]
    %v626 = vld [vmem:[#allocation9 + $0x120] sm:$0xff]
    %v627 = vld [vmem:[#allocation9 + $0x128] sm:$0xff]
    %v628 = vld [vmem:[#allocation9 + $0x130] sm:$0xff]
    %v629 = vld [vmem:[#allocation9 + $0x138] sm:$0xff]
    %v630 = vld [vmem:[#allocation9 + $0x140] sm:$0xff]
    %v631 = vld [vmem:[#allocation9 + $0x148] sm:$0xff]
    %v632 = vld [vmem:[#allocation9 + $0x150] sm:$0xff]
    %v633 = vld [vmem:[#allocation9 + $0x158] sm:$0xff]
    %v634 = vld [vmem:[#allocation9 + $0x160] sm:$0xff]
    %v635 = vld [vmem:[#allocation9 + $0x168] sm:$0xff]
    %v636 = vld [vmem:[#allocation9 + $0x170] sm:$0xff]
    %v637 = vld [vmem:[#allocation9 + $0x178] sm:$0xff]
    %v638 = vld [vmem:[#allocation9 + $0x180] sm:$0xff]
    %v639 = vld [vmem:[#allocation9 + $0x188] sm:$0xff]
    %v640 = vld [vmem:[#allocation9 + $0x190] sm:$0xff]
    %v641 = vld [vmem:[#allocation9 + $0x198] sm:$0xff]
    %v642 = vld [vmem:[#allocation9 + $0x1a0] sm:$0xff]
    %v643 = vld [vmem:[#allocation9 + $0x1a8] sm:$0xff]
    %v644 = vld [vmem:[#allocation9 + $0x1b0] sm:$0xff]
    %v645 = vld [vmem:[#allocation9 + $0x1b8] sm:$0xff]
    %v646 = vld [vmem:[#allocation9 + $0x1c0] sm:$0xff]
    %v647 = vld [vmem:[#allocation9 + $0x1c8] sm:$0xff]
    %v648 = vld [vmem:[#allocation9 + $0x1d0] sm:$0xff]
    %v649 = vld [vmem:[#allocation9 + $0x1d8] sm:$0xff]
    %v650 = vld [vmem:[#allocation9 + $0x1e0] sm:$0xff]
    %v651 = vld [vmem:[#allocation9 + $0x1e8] sm:$0xff]
    %v652 = vld [vmem:[#allocation9 + $0x1f0] sm:$0xff]
    %v653 = vld [vmem:[#allocation9 + $0x1f8] sm:$0xff]
    %v654 = vld [vmem:[#allocation9 + $0x200] sm:$0xff]
    %v655 = vld [vmem:[#allocation9 + $0x208] sm:$0xff]
    %v656 = vld [vmem:[#allocation9 + $0x210] sm:$0xff]
    %v657 = vld [vmem:[#allocation9 + $0x218] sm:$0xff]
    %v658 = vld [vmem:[#allocation9 + $0x220] sm:$0xff]
    %v659 = vld [vmem:[#allocation9 + $0x228] sm:$0xff]
    %v660 = vld [vmem:[#allocation9 + $0x230] sm:$0xff]
    %v661 = vld [vmem:[#allocation9 + $0x238] sm:$0xff]
    %v662 = vld [vmem:[#allocation9 + $0x240] sm:$0xff]
    %v663 = vld [vmem:[#allocation9 + $0x248] sm:$0xff]
    %v664 = vld [vmem:[#allocation9 + $0x250] sm:$0xff]
    %v665 = vld [vmem:[#allocation9 + $0x258] sm:$0xff]
    %v666 = vld [vmem:[#allocation9 + $0x260] sm:$0xff]
    %v667 = vld [vmem:[#allocation9 + $0x268] sm:$0xff]
    %v668 = vld [vmem:[#allocation9 + $0x270] sm:$0xff]
    %v669 = vld [vmem:[#allocation9 + $0x278] sm:$0xff]
    %v670 = vld [vmem:[#allocation9 + $0x280] sm:$0xff]
    %v671 = vld [vmem:[#allocation9 + $0x288] sm:$0xff]
    %v672 = vld [vmem:[#allocation9 + $0x290] sm:$0xff]
    %v673 = vld [vmem:[#allocation9 + $0x298] sm:$0xff]
    %v674 = vld [vmem:[#allocation9 + $0x2a0] sm:$0xff]
    %v675 = vld [vmem:[#allocation9 + $0x2a8] sm:$0xff]
    %v676 = vld [vmem:[#allocation9 + $0x2b0] sm:$0xff]
    %v677 = vld [vmem:[#allocation9 + $0x2b8] sm:$0xff]
    %v678 = vld [vmem:[#allocation9 + $0x2c0] sm:$0xff]
    %v679 = vld [vmem:[#allocation9 + $0x2c8] sm:$0xff]
    %v680 = vld [vmem:[#allocation9 + $0x2d0] sm:$0xff]
    %v681 = vld [vmem:[#allocation9 + $0x2d8] sm:$0xff]
    %v682 = vld [vmem:[#allocation9 + $0x2e0] sm:$0xff]
    %v683 = vld [vmem:[#allocation9 + $0x2e8] sm:$0xff]
    %v684 = vld [vmem:[#allocation9 + $0x2f0] sm:$0xff]
    %v685 = vld [vmem:[#allocation9 + $0x2f8] sm:$0xff]
    %v686 = vld [vmem:[#allocation9 + $0x300] sm:$0xff]
    %v687 = vld [vmem:[#allocation9 + $0x308] sm:$0xff]
    %v688 = vld [vmem:[#allocation9 + $0x310] sm:$0xff]
    %v689 = vld [vmem:[#allocation9 + $0x318] sm:$0xff]
    %v690 = vld [vmem:[#allocation9 + $0x320] sm:$0xff]
    %v691 = vld [vmem:[#allocation9 + $0x328] sm:$0xff]
    %v692 = vld [vmem:[#allocation9 + $0x330] sm:$0xff]
    %v693 = vld [vmem:[#allocation9 + $0x338] sm:$0xff]
    %v694 = vld [vmem:[#allocation9 + $0x340] sm:$0xff]
    %v695 = vld [vmem:[#allocation9 + $0x348] sm:$0xff]
    %v696 = vld [vmem:[#allocation9 + $0x350] sm:$0xff]
    %v697 = vld [vmem:[#allocation9 + $0x358] sm:$0xff]
    %v698 = vld [vmem:[#allocation9 + $0x360] sm:$0xff]
    %v699 = vld [vmem:[#allocation9 + $0x368] sm:$0xff]
    %v700 = vld [vmem:[#allocation9 + $0x370] sm:$0xff]
    %v701 = vld [vmem:[#allocation9 + $0x378] sm:$0xff]
    %v702 = vld [vmem:[#allocation9 + $0x380] sm:$0xff]
    %v703 = vld [vmem:[#allocation9 + $0x388] sm:$0xff]
    %v704 = vld [vmem:[#allocation9 + $0x390] sm:$0xff]
    %v705 = vld [vmem:[#allocation9 + $0x398] sm:$0xff]
    %v706 = vld [vmem:[#allocation9 + $0x3a0] sm:$0xff]
    %v707 = vld [vmem:[#allocation9 + $0x3a8] sm:$0xff]
    %v708 = vld [vmem:[#allocation9 + $0x3b0] sm:$0xff]
    %v709 = vld [vmem:[#allocation9 + $0x3b8] sm:$0xff]
    %v710 = vld [vmem:[#allocation9 + $0x3c0] sm:$0xff]
    %v711 = vld [vmem:[#allocation9 + $0x3c8] sm:$0xff]
    %v712 = vld [vmem:[#allocation9 + $0x3d0] sm:$0xff]
    %v713 = vld [vmem:[#allocation9 + $0x3d8] sm:$0xff]
    %v714 = vld [vmem:[#allocation9 + $0x3e0] sm:$0xff]
    %v715 = vld [vmem:[#allocation9 + $0x3e8] sm:$0xff]
    %v716 = vld [vmem:[#allocation9 + $0x3f0] sm:$0xff]
    %v717 = vld [vmem:[#allocation9 + $0x3f8] sm:$0xff]
    %v718 = vld [vmem:[#allocation9 + $0x400] sm:$0xff]
    %v719 = vld [vmem:[#allocation9 + $0x408] sm:$0xff]
    %v720 = vld [vmem:[#allocation9 + $0x410] sm:$0xff]
    %v721 = vld [vmem:[#allocation9 + $0x418] sm:$0xff]
    %v722 = vld [vmem:[#allocation9 + $0x420] sm:$0xff]
    %v723 = vld [vmem:[#allocation9 + $0x428] sm:$0xff]
    %v724 = vld [vmem:[#allocation9 + $0x430] sm:$0xff]
    %v725 = vld [vmem:[#allocation9 + $0x438] sm:$0xff]
    %v726 = vld [vmem:[#allocation9 + $0x440] sm:$0xff]
    %v727 = vld [vmem:[#allocation9 + $0x448] sm:$0xff]
    %v728 = vld [vmem:[#allocation9 + $0x450] sm:$0xff]
    %v729 = vld [vmem:[#allocation9 + $0x458] sm:$0xff]
    %v730 = vld [vmem:[#allocation9 + $0x460] sm:$0xff]
    %v731 = vld [vmem:[#allocation9 + $0x468] sm:$0xff]
    %v732 = vld [vmem:[#allocation9 + $0x470] sm:$0xff]
    %v733 = vld [vmem:[#allocation9 + $0x478] sm:$0xff]
    %v734 = vld [vmem:[#allocation9 + $0x480] sm:$0xff]
    %v735 = vld [vmem:[#allocation9 + $0x488] sm:$0xff]
    %v736 = vld [vmem:[#allocation9 + $0x490] sm:$0xff]
    %v737 = vld [vmem:[#allocation9 + $0x498] sm:$0xff]
    %v738 = vld [vmem:[#allocation9 + $0x4a0] sm:$0xff]
    %v739 = vld [vmem:[#allocation9 + $0x4a8] sm:$0xff]
    %v740 = vld [vmem:[#allocation9 + $0x4b0] sm:$0xff]
    %v741 = vld [vmem:[#allocation9 + $0x4b8] sm:$0xff]
    %v742 = vld [vmem:[#allocation9 + $0x4c0] sm:$0xff]
    %v743 = vld [vmem:[#allocation9 + $0x4c8] sm:$0xff]
    %v744 = vld [vmem:[#allocation9 + $0x4d0] sm:$0xff]
    %v745 = vld [vmem:[#allocation9 + $0x4d8] sm:$0xff]
    %v746 = vld [vmem:[#allocation9 + $0x4e0] sm:$0xff]
    %v747 = vld [vmem:[#allocation9 + $0x4e8] sm:$0xff]
    %v748 = vld [vmem:[#allocation9 + $0x4f0] sm:$0xff]
    %v749 = vld [vmem:[#allocation9 + $0x4f8] sm:$0xff]
    %v750 = vld [vmem:[#allocation9 + $0x500] sm:$0xff]
    %v751 = vld [vmem:[#allocation9 + $0x508] sm:$0xff]
    %v752 = vld [vmem:[#allocation9 + $0x510] sm:$0xff]
    %v753 = vld [vmem:[#allocation9 + $0x518] sm:$0xff]
    %v754 = vld [vmem:[#allocation9 + $0x520] sm:$0xff]
    %v755 = vld [vmem:[#allocation9 + $0x528] sm:$0xff]
    %v756 = vld [vmem:[#allocation9 + $0x530] sm:$0xff]
    %v757 = vld [vmem:[#allocation9 + $0x538] sm:$0xff]
    %v758 = vld [vmem:[#allocation9 + $0x540] sm:$0xff]
    %v759 = vld [vmem:[#allocation9 + $0x548] sm:$0xff]
    %v760 = vld [vmem:[#allocation9 + $0x550] sm:$0xff]
    %v761 = vld [vmem:[#allocation9 + $0x558] sm:$0xff]
    %v762 = vld [vmem:[#allocation9 + $0x560] sm:$0xff]
    %v763 = vld [vmem:[#allocation9 + $0x568] sm:$0xff]
    %v764 = vld [vmem:[#allocation9 + $0x570] sm:$0xff]
    %v765 = vld [vmem:[#allocation9 + $0x578] sm:$0xff]
    %v766 = vld [vmem:[#allocation9 + $0x580] sm:$0xff]
    %v767 = vld [vmem:[#allocation9 + $0x588] sm:$0xff]
    %v768 = vld [vmem:[#allocation9 + $0x590] sm:$0xff]
    %v769 = vld [vmem:[#allocation9 + $0x598] sm:$0xff]
    %v770 = vld [vmem:[#allocation9 + $0x5a0] sm:$0xff]
    %v771 = vld [vmem:[#allocation9 + $0x5a8] sm:$0xff]
    %v772 = vld [vmem:[#allocation9 + $0x5b0] sm:$0xff]
    %v773 = vld [vmem:[#allocation9 + $0x5b8] sm:$0xff]
    %v774 = vld [vmem:[#allocation9 + $0x5c0] sm:$0xff]
    %v775 = vld [vmem:[#allocation9 + $0x5c8] sm:$0xff]
    %v776 = vld [vmem:[#allocation9 + $0x5d0] sm:$0xff]
    %v777 = vld [vmem:[#allocation9 + $0x5d8] sm:$0xff]
    %v778 = vld [vmem:[#allocation9 + $0x5e0] sm:$0xff]
    %v779 = vld [vmem:[#allocation9 + $0x5e8] sm:$0xff]
    %v780 = vld [vmem:[#allocation9 + $0x5f0] sm:$0xff]
    %v781 = vld [vmem:[#allocation9 + $0x5f8] sm:$0xff]
    %v782 = vld [vmem:[#allocation9 + $0x600] sm:$0xff]
    %v783 = vld [vmem:[#allocation9 + $0x608] sm:$0xff]
    %v784 = vld [vmem:[#allocation9 + $0x610] sm:$0xff]
    %v785 = vld [vmem:[#allocation9 + $0x618] sm:$0xff]
    %v786 = vld [vmem:[#allocation9 + $0x620] sm:$0xff]
    %v787 = vld [vmem:[#allocation9 + $0x628] sm:$0xff]
    %v788 = vld [vmem:[#allocation9 + $0x630] sm:$0xff]
    %v789 = vld [vmem:[#allocation9 + $0x638] sm:$0xff]
    %v790 = vld [vmem:[#allocation9 + $0x640] sm:$0xff]
    %v791 = vld [vmem:[#allocation9 + $0x648] sm:$0xff]
    %v792 = vld [vmem:[#allocation9 + $0x650] sm:$0xff]
    %v793 = vld [vmem:[#allocation9 + $0x658] sm:$0xff]
    %v794 = vld [vmem:[#allocation9 + $0x660] sm:$0xff]
    %v795 = vld [vmem:[#allocation9 + $0x668] sm:$0xff]
    %v796 = vld [vmem:[#allocation9 + $0x670] sm:$0xff]
    %v797 = vld [vmem:[#allocation9 + $0x678] sm:$0xff]
    %v798 = vld [vmem:[#allocation9 + $0x680] sm:$0xff]
    %v799 = vld [vmem:[#allocation9 + $0x688] sm:$0xff]
    %v800 = vld [vmem:[#allocation9 + $0x690] sm:$0xff]
    %v801 = vld [vmem:[#allocation9 + $0x698] sm:$0xff]
    %v802 = vld [vmem:[#allocation9 + $0x6a0] sm:$0xff]
    %v803 = vld [vmem:[#allocation9 + $0x6a8] sm:$0xff]
    %v804 = vld [vmem:[#allocation9 + $0x6b0] sm:$0xff]
    %v805 = vld [vmem:[#allocation9 + $0x6b8] sm:$0xff]
    %v806 = vld [vmem:[#allocation9 + $0x6c0] sm:$0xff]
    %v807 = vld [vmem:[#allocation9 + $0x6c8] sm:$0xff]
    %v808 = vld [vmem:[#allocation9 + $0x6d0] sm:$0xff]
    %v809 = vld [vmem:[#allocation9 + $0x6d8] sm:$0xff]
    %v810 = vld [vmem:[#allocation9 + $0x6e0] sm:$0xff]
    %v811 = vld [vmem:[#allocation9 + $0x6e8] sm:$0xff]
    %v812 = vld [vmem:[#allocation9 + $0x6f0] sm:$0xff]
    %v813 = vld [vmem:[#allocation9 + $0x6f8] sm:$0xff]
    %v814 = vld [vmem:[#allocation9 + $0x700] sm:$0xff]
    %v815 = vld [vmem:[#allocation9 + $0x708] sm:$0xff]
    %v816 = vld [vmem:[#allocation9 + $0x710] sm:$0xff]
    %v817 = vld [vmem:[#allocation9 + $0x718] sm:$0xff]
    %v818 = vld [vmem:[#allocation9 + $0x720] sm:$0xff]
    %v819 = vld [vmem:[#allocation9 + $0x728] sm:$0xff]
    %v820 = vld [vmem:[#allocation9 + $0x730] sm:$0xff]
    %v821 = vld [vmem:[#allocation9 + $0x738] sm:$0xff]
    %v822 = vld [vmem:[#allocation9 + $0x740] sm:$0xff]
    %v823 = vld [vmem:[#allocation9 + $0x748] sm:$0xff]
    %v824 = vld [vmem:[#allocation9 + $0x750] sm:$0xff]
    %v825 = vld [vmem:[#allocation9 + $0x758] sm:$0xff]
    %v826 = vld [vmem:[#allocation9 + $0x760] sm:$0xff]
    %v827 = vld [vmem:[#allocation9 + $0x768] sm:$0xff]
    %v828 = vld [vmem:[#allocation9 + $0x770] sm:$0xff]
    %v829 = vld [vmem:[#allocation9 + $0x778] sm:$0xff]
    %v830 = vld [vmem:[#allocation9 + $0x780] sm:$0xff]
    %v831 = vld [vmem:[#allocation9 + $0x788] sm:$0xff]
    %v832 = vld [vmem:[#allocation9 + $0x790] sm:$0xff]
    %v833 = vld [vmem:[#allocation9 + $0x798] sm:$0xff]
    %v834 = vld [vmem:[#allocation9 + $0x7a0] sm:$0xff]
    %v835 = vld [vmem:[#allocation9 + $0x7a8] sm:$0xff]
    %v836 = vld [vmem:[#allocation9 + $0x7b0] sm:$0xff]
    %v837 = vld [vmem:[#allocation9 + $0x7b8] sm:$0xff]
    %v838 = vld [vmem:[#allocation9 + $0x7c0] sm:$0xff]
    %v839 = vld [vmem:[#allocation9 + $0x7c8] sm:$0xff]
    %v840 = vld [vmem:[#allocation9 + $0x7d0] sm:$0xff]
    %v841 = vld [vmem:[#allocation9 + $0x7d8] sm:$0xff]
    %v842 = vld [vmem:[#allocation9 + $0x7e0] sm:$0xff]
    %v843 = vld [vmem:[#allocation9 + $0x7e8] sm:$0xff]
    %v844 = vld [vmem:[#allocation9 + $0x7f0] sm:$0xff]
    %v845 = vld [vmem:[#allocation9 + $0x7f8] sm:$0xff]
    %v846 = vld [vmem:[#allocation9 + $0x800] sm:$0xff]
    %v847 = vld [vmem:[#allocation9 + $0x808] sm:$0xff]
    %v848 = vld [vmem:[#allocation9 + $0x810] sm:$0xff]
    %v849 = vld [vmem:[#allocation9 + $0x818] sm:$0xff]
    %v850 = vld [vmem:[#allocation9 + $0x820] sm:$0xff]
    %v851 = vld [vmem:[#allocation9 + $0x828] sm:$0xff]
    %v852 = vld [vmem:[#allocation9 + $0x830] sm:$0xff]
    %v853 = vld [vmem:[#allocation9 + $0x838] sm:$0xff]
    %v854 = vld [vmem:[#allocation9 + $0x840] sm:$0xff]
    %v855 = vld [vmem:[#allocation9 + $0x848] sm:$0xff]
    %v856 = vld [vmem:[#allocation9 + $0x850] sm:$0xff]
    %v857 = vld [vmem:[#allocation9 + $0x858] sm:$0xff]
    %v858 = vld [vmem:[#allocation9 + $0x860] sm:$0xff]
    %v859 = vld [vmem:[#allocation9 + $0x868] sm:$0xff]
    %v860 = vld [vmem:[#allocation9 + $0x870] sm:$0xff]
    %v861 = vld [vmem:[#allocation9 + $0x878] sm:$0xff]
    %v862 = vld [vmem:[#allocation9 + $0x880] sm:$0xff]
    %v863 = vld [vmem:[#allocation9 + $0x888] sm:$0xff]
    %v864 = vld [vmem:[#allocation9 + $0x890] sm:$0xff]
    %v865 = vld [vmem:[#allocation9 + $0x898] sm:$0xff]
    %v866 = vld [vmem:[#allocation9 + $0x8a0] sm:$0xff]
    %v867 = vld [vmem:[#allocation9 + $0x8a8] sm:$0xff]
    %v868 = vld [vmem:[#allocation9 + $0x8b0] sm:$0xff]
    %v869 = vld [vmem:[#allocation9 + $0x8b8] sm:$0xff]
    %v870 = vld [vmem:[#allocation9 + $0x8c0] sm:$0xff]
    %v871 = vld [vmem:[#allocation9 + $0x8c8] sm:$0xff]
    %v872 = vld [vmem:[#allocation9 + $0x8d0] sm:$0xff]
    %v873 = vld [vmem:[#allocation9 + $0x8d8] sm:$0xff]
    %v874 = vld [vmem:[#allocation9 + $0x8e0] sm:$0xff]
    %v875 = vld [vmem:[#allocation9 + $0x8e8] sm:$0xff]
    %v876 = vld [vmem:[#allocation9 + $0x8f0] sm:$0xff]
    %v877 = vld [vmem:[#allocation9 + $0x8f8] sm:$0xff]
    %v878 = vld [vmem:[#allocation9 + $0x900] sm:$0xff]
    %v879 = vld [vmem:[#allocation9 + $0x908] sm:$0xff]
    %v880 = vld [vmem:[#allocation9 + $0x910] sm:$0xff]
    %v881 = vld [vmem:[#allocation9 + $0x918] sm:$0xff]
    %v882 = vld [vmem:[#allocation9 + $0x920] sm:$0xff]
    %v883 = vld [vmem:[#allocation9 + $0x928] sm:$0xff]
    %v884 = vld [vmem:[#allocation9 + $0x930] sm:$0xff]
    %v885 = vld [vmem:[#allocation9 + $0x938] sm:$0xff]
    %v886 = vld [vmem:[#allocation9 + $0x940] sm:$0xff]
    %v887 = vld [vmem:[#allocation9 + $0x948] sm:$0xff]
    %v888 = vld [vmem:[#allocation9 + $0x950] sm:$0xff]
    %v889 = vld [vmem:[#allocation9 + $0x958] sm:$0xff]
    %v890 = vld [vmem:[#allocation9 + $0x960] sm:$0xff]
    %v891 = vld [vmem:[#allocation9 + $0x968] sm:$0xff]
    %v892 = vld [vmem:[#allocation9 + $0x970] sm:$0xff]
    %v893 = vld [vmem:[#allocation9 + $0x978] sm:$0xff]
    %v894 = vld [vmem:[#allocation9 + $0x980] sm:$0xff]
    %v895 = vld [vmem:[#allocation9 + $0x988] sm:$0xff]
    %v896 = vld [vmem:[#allocation9 + $0x990] sm:$0xff]
    %v897 = vld [vmem:[#allocation9 + $0x998] sm:$0xff]
    %v898 = vld [vmem:[#allocation9 + $0x9a0] sm:$0xff]
    %v899 = vld [vmem:[#allocation9 + $0x9a8] sm:$0xff]
    %v900 = vld [vmem:[#allocation9 + $0x9b0] sm:$0xff]
    %v901 = vld [vmem:[#allocation9 + $0x9b8] sm:$0xff]
    %v902 = vld [vmem:[#allocation9 + $0x9c0] sm:$0xff]
    %v903 = vld [vmem:[#allocation9 + $0x9c8] sm:$0xff]
    %v904 = vld [vmem:[#allocation9 + $0x9d0] sm:$0xff]
    %v905 = vld [vmem:[#allocation9 + $0x9d8] sm:$0xff]
    %v906 = vld [vmem:[#allocation9 + $0x9e0] sm:$0xff]
    %v907 = vld [vmem:[#allocation9 + $0x9e8] sm:$0xff]
    %v908 = vld [vmem:[#allocation9 + $0x9f0] sm:$0xff]
    %v909 = vld [vmem:[#allocation9 + $0x9f8] sm:$0xff]
    %v910 = vld [vmem:[#allocation9 + $0xa00] sm:$0xff]
    %v911 = vld [vmem:[#allocation9 + $0xa08] sm:$0xff]
    %v912 = vld [vmem:[#allocation9 + $0xa10] sm:$0xff]
    %v913 = vld [vmem:[#allocation9 + $0xa18] sm:$0xff]
    %v914 = vld [vmem:[#allocation9 + $0xa20] sm:$0xff]
    %v915 = vld [vmem:[#allocation9 + $0xa28] sm:$0xff]
    %v916 = vld [vmem:[#allocation9 + $0xa30] sm:$0xff]
    %v917 = vld [vmem:[#allocation9 + $0xa38] sm:$0xff]
    %v918 = vld [vmem:[#allocation9 + $0xa40] sm:$0xff]
    %v919 = vld [vmem:[#allocation9 + $0xa48] sm:$0xff]
    %v920 = vld [vmem:[#allocation9 + $0xa50] sm:$0xff]
    %v921 = vld [vmem:[#allocation9 + $0xa58] sm:$0xff]
    %v922 = vld [vmem:[#allocation9 + $0xa60] sm:$0xff]
    %v923 = vld [vmem:[#allocation9 + $0xa68] sm:$0xff]
    %v924 = vld [vmem:[#allocation9 + $0xa70] sm:$0xff]
    %v925 = vld [vmem:[#allocation9 + $0xa78] sm:$0xff]
    %v926 = vld [vmem:[#allocation9 + $0xa80] sm:$0xff]
    %v927 = vld [vmem:[#allocation9 + $0xa88] sm:$0xff]
    %v928 = vld [vmem:[#allocation9 + $0xa90] sm:$0xff]
    %v929 = vld [vmem:[#allocation9 + $0xa98] sm:$0xff]
    %v930 = vld [vmem:[#allocation9 + $0xaa0] sm:$0xff]
    %v931 = vld [vmem:[#allocation9 + $0xaa8] sm:$0xff]
    %v932 = vld [vmem:[#allocation9 + $0xab0] sm:$0xff]
    %v933 = vld [vmem:[#allocation9 + $0xab8] sm:$0xff]
    %v934 = vld [vmem:[#allocation9 + $0xac0] sm:$0xff]
    %v935 = vld [vmem:[#allocation9 + $0xac8] sm:$0xff]
    %v936 = vld [vmem:[#allocation9 + $0xad0] sm:$0xff]
    %v937 = vld [vmem:[#allocation9 + $0xad8] sm:$0xff]
    %v938 = vld [vmem:[#allocation9 + $0xae0] sm:$0xff]
    %v939 = vld [vmem:[#allocation9 + $0xae8] sm:$0xff]
    %v940 = vld [vmem:[#allocation9 + $0xaf0] sm:$0xff]
    %v941 = vld [vmem:[#allocation9 + $0xaf8] sm:$0xff]
    %v942 = vld [vmem:[#allocation9 + $0xb00] sm:$0xff]
    %v943 = vld [vmem:[#allocation9 + $0xb08] sm:$0xff]
    %v944 = vld [vmem:[#allocation9 + $0xb10] sm:$0xff]
    %v945 = vld [vmem:[#allocation9 + $0xb18] sm:$0xff]
    %v946 = vld [vmem:[#allocation9 + $0xb20] sm:$0xff]
    %v947 = vld [vmem:[#allocation9 + $0xb28] sm:$0xff]
    %v948 = vld [vmem:[#allocation9 + $0xb30] sm:$0xff]
    %v949 = vld [vmem:[#allocation9 + $0xb38] sm:$0xff]
    %v950 = vld [vmem:[#allocation9 + $0xb40] sm:$0xff]
    %v951 = vld [vmem:[#allocation9 + $0xb48] sm:$0xff]
    %v952 = vld [vmem:[#allocation9 + $0xb50] sm:$0xff]
    %v953 = vld [vmem:[#allocation9 + $0xb58] sm:$0xff]
    %v954 = vld [vmem:[#allocation9 + $0xb60] sm:$0xff]
    %v955 = vld [vmem:[#allocation9 + $0xb68] sm:$0xff]
    %v956 = vld [vmem:[#allocation9 + $0xb70] sm:$0xff]
    %v957 = vld [vmem:[#allocation9 + $0xb78] sm:$0xff]
    %v958 = vld [vmem:[#allocation9 + $0xb80] sm:$0xff]
    %v959 = vld [vmem:[#allocation9 + $0xb88] sm:$0xff]
    %v960 = vld [vmem:[#allocation9 + $0xb90] sm:$0xff]
    %v961 = vld [vmem:[#allocation9 + $0xb98] sm:$0xff]
    %v962 = vld [vmem:[#allocation9 + $0xba0] sm:$0xff]
    %v963 = vld [vmem:[#allocation9 + $0xba8] sm:$0xff]
    %v964 = vld [vmem:[#allocation9 + $0xbb0] sm:$0xff]
    %v965 = vld [vmem:[#allocation9 + $0xbb8] sm:$0xff]
    %v966 = vld [vmem:[#allocation9 + $0xbc0] sm:$0xff]
    %v967 = vld [vmem:[#allocation9 + $0xbc8] sm:$0xff]
    %v968 = vld [vmem:[#allocation9 + $0xbd0] sm:$0xff]
    %v969 = vld [vmem:[#allocation9 + $0xbd8] sm:$0xff]
    %v970 = vld [vmem:[#allocation9 + $0xbe0] sm:$0xff]
    %v971 = vld [vmem:[#allocation9 + $0xbe8] sm:$0xff]
    %v972 = vld [vmem:[#allocation9 + $0xbf0] sm:$0xff]
    %v973 = vld [vmem:[#allocation9 + $0xbf8] sm:$0xff]
    %v974 = vld [vmem:[#allocation9 + $0xc00] sm:$0xff]
    %v975 = vld [vmem:[#allocation9 + $0xc08] sm:$0xff]
    %v976 = vld [vmem:[#allocation9 + $0xc10] sm:$0xff]
    %v977 = vld [vmem:[#allocation9 + $0xc18] sm:$0xff]
    %v978 = vld [vmem:[#allocation9 + $0xc20] sm:$0xff]
    %v979 = vld [vmem:[#allocation9 + $0xc28] sm:$0xff]
    %v980 = vld [vmem:[#allocation9 + $0xc30] sm:$0xff]
    %v981 = vld [vmem:[#allocation9 + $0xc38] sm:$0xff]
    %v982 = vld [vmem:[#allocation9 + $0xc40] sm:$0xff]
    %v983 = vld [vmem:[#allocation9 + $0xc48] sm:$0xff]
    %v984 = vld [vmem:[#allocation9 + $0xc50] sm:$0xff]
    %v985 = vld [vmem:[#allocation9 + $0xc58] sm:$0xff]
    %v986 = vld [vmem:[#allocation9 + $0xc60] sm:$0xff]
    %v987 = vld [vmem:[#allocation9 + $0xc68] sm:$0xff]
    %v988 = vld [vmem:[#allocation9 + $0xc70] sm:$0xff]
    %v989 = vld [vmem:[#allocation9 + $0xc78] sm:$0xff]
    %v990 = vld [vmem:[#allocation9 + $0xc80] sm:$0xff]
    %v991 = vld [vmem:[#allocation9 + $0xc88] sm:$0xff]
    %v992 = vld [vmem:[#allocation9 + $0xc90] sm:$0xff]
    %v993 = vld [vmem:[#allocation9 + $0xc98] sm:$0xff]
    %v994 = vld [vmem:[#allocation9 + $0xca0] sm:$0xff]
    %v995 = vld [vmem:[#allocation9 + $0xca8] sm:$0xff]
    %v996 = vld [vmem:[#allocation9 + $0xcb0] sm:$0xff]
    %v997 = vld [vmem:[#allocation9 + $0xcb8] sm:$0xff]
    %v998 = vld [vmem:[#allocation9 + $0xcc0] sm:$0xff]
    %v999 = vld [vmem:[#allocation9 + $0xcc8] sm:$0xff]
    %v1000 = vld [vmem:[#allocation9 + $0xcd0] sm:$0xff]
    %v1001 = vld [vmem:[#allocation9 + $0xcd8] sm:$0xff]
    %v1002 = vld [vmem:[#allocation9 + $0xce0] sm:$0xff]
    %v1003 = vld [vmem:[#allocation9 + $0xce8] sm:$0xff]
    %v1004 = vld [vmem:[#allocation9 + $0xcf0] sm:$0xff]
    %v1005 = vld [vmem:[#allocation9 + $0xcf8] sm:$0xff]
    %v1006 = vld [vmem:[#allocation9 + $0xd00] sm:$0xff]
    %v1007 = vld [vmem:[#allocation9 + $0xd08] sm:$0xff]
    %v1008 = vld [vmem:[#allocation9 + $0xd10] sm:$0xff]
    %v1009 = vld [vmem:[#allocation9 + $0xd18] sm:$0xff]
    %v1010 = vld [vmem:[#allocation9 + $0xd20] sm:$0xff]
    %v1011 = vld [vmem:[#allocation9 + $0xd28] sm:$0xff]
    %v1012 = vld [vmem:[#allocation9 + $0xd30] sm:$0xff]
    %v1013 = vld [vmem:[#allocation9 + $0xd38] sm:$0xff]
    %v1014 = vld [vmem:[#allocation9 + $0xd40] sm:$0xff]
    %v1015 = vld [vmem:[#allocation9 + $0xd48] sm:$0xff]
    %v1016 = vld [vmem:[#allocation9 + $0xd50] sm:$0xff]
    %v1017 = vld [vmem:[#allocation9 + $0xd58] sm:$0xff]
    %v1018 = vld [vmem:[#allocation9 + $0xd60] sm:$0xff]
    %v1019 = vld [vmem:[#allocation9 + $0xd68] sm:$0xff]
    %v1020 = vld [vmem:[#allocation9 + $0xd70] sm:$0xff]
    %v1021 = vld [vmem:[#allocation9 + $0xd78] sm:$0xff]
    %v1022 = vld [vmem:[#allocation9 + $0xd80] sm:$0xff]
    %v1023 = vld [vmem:[#allocation9 + $0xd88] sm:$0xff]
    %v1024 = vld [vmem:[#allocation9 + $0xd90] sm:$0xff]
    %v1025 = vld [vmem:[#allocation9 + $0xd98] sm:$0xff]
    %v1026 = vld [vmem:[#allocation9 + $0xda0] sm:$0xff]
    %v1027 = vld [vmem:[#allocation9 + $0xda8] sm:$0xff]
    %v1028 = vld [vmem:[#allocation9 + $0xdb0] sm:$0xff]
    %v1029 = vld [vmem:[#allocation9 + $0xdb8] sm:$0xff]
    %v1030 = vld [vmem:[#allocation9 + $0xdc0] sm:$0xff]
    %v1031 = vld [vmem:[#allocation9 + $0xdc8] sm:$0xff]
    %v1032 = vld [vmem:[#allocation9 + $0xdd0] sm:$0xff]
    %v1033 = vld [vmem:[#allocation9 + $0xdd8] sm:$0xff]
    %v1034 = vld [vmem:[#allocation9 + $0xde0] sm:$0xff]
    %v1035 = vld [vmem:[#allocation9 + $0xde8] sm:$0xff]
    %v1036 = vld [vmem:[#allocation9 + $0xdf0] sm:$0xff]
    %v1037 = vld [vmem:[#allocation9 + $0xdf8] sm:$0xff]
    %v1038 = vld [vmem:[#allocation9 + $0xe00] sm:$0xff]
    %v1039 = vld [vmem:[#allocation9 + $0xe08] sm:$0xff]
    %v1040 = vld [vmem:[#allocation9 + $0xe10] sm:$0xff]
    %v1041 = vld [vmem:[#allocation9 + $0xe18] sm:$0xff]
    %v1042 = vld [vmem:[#allocation9 + $0xe20] sm:$0xff]
    %v1043 = vld [vmem:[#allocation9 + $0xe28] sm:$0xff]
    %v1044 = vld [vmem:[#allocation9 + $0xe30] sm:$0xff]
    %v1045 = vld [vmem:[#allocation9 + $0xe38] sm:$0xff]
    %v1046 = vld [vmem:[#allocation9 + $0xe40] sm:$0xff]
    %v1047 = vld [vmem:[#allocation9 + $0xe48] sm:$0xff]
    %v1048 = vld [vmem:[#allocation9 + $0xe50] sm:$0xff]
    %v1049 = vld [vmem:[#allocation9 + $0xe58] sm:$0xff]
    %v1050 = vld [vmem:[#allocation9 + $0xe60] sm:$0xff]
    %v1051 = vld [vmem:[#allocation9 + $0xe68] sm:$0xff]
    %v1052 = vld [vmem:[#allocation9 + $0xe70] sm:$0xff]
    %v1053 = vld [vmem:[#allocation9 + $0xe78] sm:$0xff]
    %v1054 = vld [vmem:[#allocation9 + $0xe80] sm:$0xff]
    %v1055 = vld [vmem:[#allocation9 + $0xe88] sm:$0xff]
    %v1056 = vld [vmem:[#allocation9 + $0xe90] sm:$0xff]
    %v1057 = vld [vmem:[#allocation9 + $0xe98] sm:$0xff]
    %v1058 = vld [vmem:[#allocation9 + $0xea0] sm:$0xff]
    %v1059 = vld [vmem:[#allocation9 + $0xea8] sm:$0xff]
    %v1060 = vld [vmem:[#allocation9 + $0xeb0] sm:$0xff]
    %v1061 = vld [vmem:[#allocation9 + $0xeb8] sm:$0xff]
    %v1062 = vld [vmem:[#allocation9 + $0xec0] sm:$0xff]
    %v1063 = vld [vmem:[#allocation9 + $0xec8] sm:$0xff]
    %v1064 = vld [vmem:[#allocation9 + $0xed0] sm:$0xff]
    %v1065 = vld [vmem:[#allocation9 + $0xed8] sm:$0xff]
    %v1066 = vld [vmem:[#allocation9 + $0xee0] sm:$0xff]
    %v1067 = vld [vmem:[#allocation9 + $0xee8] sm:$0xff]
    %v1068 = vld [vmem:[#allocation9 + $0xef0] sm:$0xff]
    %v1069 = vld [vmem:[#allocation9 + $0xef8] sm:$0xff]
    %v1070 = vld [vmem:[#allocation9 + $0xf00] sm:$0xff]
    %v1071 = vld [vmem:[#allocation9 + $0xf08] sm:$0xff]
    %v1072 = vld [vmem:[#allocation9 + $0xf10] sm:$0xff]
    %v1073 = vld [vmem:[#allocation9 + $0xf18] sm:$0xff]
    %v1074 = vld [vmem:[#allocation9 + $0xf20] sm:$0xff]
    %v1075 = vld [vmem:[#allocation9 + $0xf28] sm:$0xff]
    %v1076 = vld [vmem:[#allocation9 + $0xf30] sm:$0xff]
    %v1077 = vld [vmem:[#allocation9 + $0xf38] sm:$0xff]
    %v1078 = vld [vmem:[#allocation9 + $0xf40] sm:$0xff]
    %v1079 = vld [vmem:[#allocation9 + $0xf48] sm:$0xff]
    %v1080 = vld [vmem:[#allocation9 + $0xf50] sm:$0xff]
    %v1081 = vld [vmem:[#allocation9 + $0xf58] sm:$0xff]
    %v1082 = vld [vmem:[#allocation9 + $0xf60] sm:$0xff]
    %v1083 = vld [vmem:[#allocation9 + $0xf68] sm:$0xff]
    %v1084 = vld [vmem:[#allocation9 + $0xf70] sm:$0xff]
    %v1085 = vld [vmem:[#allocation9 + $0xf78] sm:$0xff]
    %v1086 = vld [vmem:[#allocation9 + $0xf80] sm:$0xff]
    %v1087 = vld [vmem:[#allocation9 + $0xf88] sm:$0xff]
    %v1088 = vld [vmem:[#allocation9 + $0xf90] sm:$0xff]
    %v1089 = vld [vmem:[#allocation9 + $0xf98] sm:$0xff]
    %v1090 = vld [vmem:[#allocation9 + $0xfa0] sm:$0xff]
    %v1091 = vld [vmem:[#allocation9 + $0xfa8] sm:$0xff]
    %v1092 = vld [vmem:[#allocation9 + $0xfb0] sm:$0xff]
    %v1093 = vld [vmem:[#allocation9 + $0xfb8] sm:$0xff]
    %v1094 = vld [vmem:[#allocation9 + $0xfc0] sm:$0xff]
    %v1095 = vld [vmem:[#allocation9 + $0xfc8] sm:$0xff]
    %v1096 = vld [vmem:[#allocation9 + $0xfd0] sm:$0xff]
    %v1097 = vld [vmem:[#allocation9 + $0xfd8] sm:$0xff]
    %v1098 = vld [vmem:[#allocation9 + $0xfe0] sm:$0xff]
    %v1099 = vld [vmem:[#allocation9 + $0xfe8] sm:$0xff]
    %v1100 = vld [vmem:[#allocation9 + $0xff0] sm:$0xff]
    %v1101 = vld [vmem:[#allocation9 + $0xff8] sm:$0xff]
    %v1102 = vld [vmem:[#allocation10] sm:$0xff]
    %v1104 = vlaneseq
    %v1105 = vshrl.u32 %v1104, 7
    %v1106 = vsub.s32 0, %v1105
    %v1107 = vrot.slane %v1102, %v1106
    %v1108 = vlaneseq
    %v1109 = vshrl.u32 %v1108, 7
    %v1110 = vsub.s32 1, %v1109
    %v1111 = vrot.slane %v1102, %v1110
    %v1112 = vlaneseq
    %v1113 = vshrl.u32 %v1112, 7
    %v1114 = vsub.s32 2, %v1113
    %v1115 = vrot.slane %v1102, %v1114
    %v1116 = vlaneseq
    %v1117 = vshrl.u32 %v1116, 7
    %v1118 = vsub.s32 3, %v1117
    %v1119 = vrot.slane %v1102, %v1118
    %v1120 = vlaneseq
    %v1121 = vshrl.u32 %v1120, 7
    %v1122 = vsub.s32 4, %v1121
    %v1123 = vrot.slane %v1102, %v1122
    %v1124 = vlaneseq
    %v1125 = vshrl.u32 %v1124, 7
    %v1126 = vsub.s32 5, %v1125
    %v1127 = vrot.slane %v1102, %v1126
    %v1128 = vlaneseq
    %v1129 = vshrl.u32 %v1128, 7
    %v1130 = vsub.s32 6, %v1129
    %v1131 = vrot.slane %v1102, %v1130
    %v1132 = vlaneseq
    %v1133 = vshrl.u32 %v1132, 7
    %v1134 = vsub.s32 7, %v1133
    %v1135 = vrot.slane %v1102, %v1134
    %1144 = vmatprep.subr.mxu0 %v591
    %1145 = vmatpush1.msra.mxu0 %v590
    %1146 = vmatprep.subr.mxu0 %v599
    %1147 = vmatpush1.msra.mxu0 %v598
    %1148 = vmatprep.subr.mxu0 %v607
    %1149 = vmatpush1.msra.mxu0 %v606
    %1150 = vmatprep.subr.mxu0 %v615
    %1151 = vmatpush1.msra.mxu0 %v614
    %1152 = vmatprep.subr.mxu0 %v623
    %1153 = vmatpush1.msra.mxu0 %v622
    %1154 = vmatprep.subr.mxu0 %v631
    %1155 = vmatpush1.msra.mxu0 %v630
    %1156 = vmatprep.subr.mxu0 %v639
    %1157 = vmatpush1.msra.mxu0 %v638
    %1158 = vmatprep.subr.mxu0 %v647
    %1159 = vmatpush1.msra.mxu0 %v646
    %1160 = vmatprep.subr.mxu0 %v655
    %1161 = vmatpush1.msra.mxu0 %v654
    %1162 = vmatprep.subr.mxu0 %v663
    %1163 = vmatpush1.msra.mxu0 %v662
    %1164 = vmatprep.subr.mxu0 %v671
    %1165 = vmatpush1.msra.mxu0 %v670
    %1166 = vmatprep.subr.mxu0 %v679
    %1167 = vmatpush1.msra.mxu0 %v678
    %1168 = vmatprep.subr.mxu0 %v687
    %1169 = vmatpush1.msra.mxu0 %v686
    %1170 = vmatprep.subr.mxu0 %v695
    %1171 = vmatpush1.msra.mxu0 %v694
    %1172 = vmatprep.subr.mxu0 %v703
    %1173 = vmatpush1.msra.mxu0 %v702
    %1174 = vmatprep.subr.mxu0 %v711
    %1175 = vmatpush1.msra.mxu0 %v710
    %1176 = vmatprep.subr.mxu0 %v719
    %1177 = vmatpush1.msra.mxu0 %v718
    %1178 = vmatprep.subr.mxu0 %v727
    %1179 = vmatpush1.msra.mxu0 %v726
    %1180 = vmatprep.subr.mxu0 %v735
    %1181 = vmatpush1.msra.mxu0 %v734
    %1182 = vmatprep.subr.mxu0 %v743
    %1183 = vmatpush1.msra.mxu0 %v742
    %1184 = vmatprep.subr.mxu0 %v751
    %1185 = vmatpush1.msra.mxu0 %v750
    %1186 = vmatprep.subr.mxu0 %v759
    %1187 = vmatpush1.msra.mxu0 %v758
    %1188 = vmatprep.subr.mxu0 %v767
    %1189 = vmatpush1.msra.mxu0 %v766
    %1190 = vmatprep.subr.mxu0 %v775
    %1191 = vmatpush1.msra.mxu0 %v774
    %1192 = vmatprep.subr.mxu0 %v783
    %1193 = vmatpush1.msra.mxu0 %v782
    %1194 = vmatprep.subr.mxu0 %v791
    %1195 = vmatpush1.msra.mxu0 %v790
    %1196 = vmatprep.subr.mxu0 %v799
    %1197 = vmatpush1.msra.mxu0 %v798
    %1198 = vmatprep.subr.mxu0 %v807
    %1199 = vmatpush1.msra.mxu0 %v806
    %1200 = vmatprep.subr.mxu0 %v815
    %1201 = vmatpush1.msra.mxu0 %v814
    %1202 = vmatprep.subr.mxu0 %v823
    %1203 = vmatpush1.msra.mxu0 %v822
    %1204 = vmatprep.subr.mxu0 %v831
    %1205 = vmatpush1.msra.mxu0 %v830
    %1206 = vmatprep.subr.mxu0 %v839
    %1207 = vmatpush1.msra.mxu0 %v838
    %1208 = vmatprep.mubr.f32.mxu0 %v587
    %1209 = vmatmul.mubr.f32.gmra.mrb[0].mxu0 %v586
    %v1210 = vpop.f32.mrb[0].mxu0
    %v1211 = vadd.f32 %v1107, %v1210
    %v1212 = vpop.f32.mrb[0].mxu0
    %v1213 = vadd.f32 %v1111, %v1212
    %1214 = vdwg.mxu0
    %1215 = vmatprep.subr.mxu0 %v847
    %1216 = vmatpush1.msra.mxu0 %v846
    %1217 = vmatprep.subr.mxu0 %v855
    %1218 = vmatpush1.msra.mxu0 %v854
    %1219 = vmatprep.subr.mxu0 %v863
    %1220 = vmatpush1.msra.mxu0 %v862
    %1221 = vmatprep.subr.mxu0 %v871
    %1222 = vmatpush1.msra.mxu0 %v870
    %1223 = vmatprep.subr.mxu0 %v879
    %1224 = vmatpush1.msra.mxu0 %v878
    %1225 = vmatprep.subr.mxu0 %v887
    %1226 = vmatpush1.msra.mxu0 %v886
    %1227 = vmatprep.subr.mxu0 %v895
    %1228 = vmatpush1.msra.mxu0 %v894
    %1229 = vmatprep.subr.mxu0 %v903
    %1230 = vmatpush1.msra.mxu0 %v902
    %1231 = vmatprep.subr.mxu0 %v911
    %1232 = vmatpush1.msra.mxu0 %v910
    %1233 = vmatprep.subr.mxu0 %v919
    %1234 = vmatpush1.msra.mxu0 %v918
    %1235 = vmatprep.subr.mxu0 %v927
    %1236 = vmatpush1.msra.mxu0 %v926
    %1237 = vmatprep.subr.mxu0 %v935
    %1238 = vmatpush1.msra.mxu0 %v934
    %1239 = vmatprep.subr.mxu0 %v943
    %1240 = vmatpush1.msra.mxu0 %v942
    %1241 = vmatprep.subr.mxu0 %v951
    %1242 = vmatpush1.msra.mxu0 %v950
    %1243 = vmatprep.subr.mxu0 %v959
    %1244 = vmatpush1.msra.mxu0 %v958
    %1245 = vmatprep.subr.mxu0 %v967
    %1246 = vmatpush1.msra.mxu0 %v966
    %1247 = vmatprep.subr.mxu0 %v975
    %1248 = vmatpush1.msra.mxu0 %v974
    %1249 = vmatprep.subr.mxu0 %v983
    %1250 = vmatpush1.msra.mxu0 %v982
    %1251 = vmatprep.subr.mxu0 %v991
    %1252 = vmatpush1.msra.mxu0 %v990
    %1253 = vmatprep.subr.mxu0 %v999
    %1254 = vmatpush1.msra.mxu0 %v998
    %1255 = vmatprep.subr.mxu0 %v1007
    %1256 = vmatpush1.msra.mxu0 %v1006
    %1257 = vmatprep.subr.mxu0 %v1015
    %1258 = vmatpush1.msra.mxu0 %v1014
    %1259 = vmatprep.subr.mxu0 %v1023
    %1260 = vmatpush1.msra.mxu0 %v1022
    %1261 = vmatprep.subr.mxu0 %v1031
    %1262 = vmatpush1.msra.mxu0 %v1030
    %1263 = vmatprep.subr.mxu0 %v1039
    %1264 = vmatpush1.msra.mxu0 %v1038
    %1265 = vmatprep.subr.mxu0 %v1047
    %1266 = vmatpush1.msra.mxu0 %v1046
    %1267 = vmatprep.subr.mxu0 %v1055
    %1268 = vmatpush1.msra.mxu0 %v1054
    %1269 = vmatprep.subr.mxu0 %v1063
    %1270 = vmatpush1.msra.mxu0 %v1062
    %1271 = vmatprep.subr.mxu0 %v1071
    %1272 = vmatpush1.msra.mxu0 %v1070
    %1273 = vmatprep.subr.mxu0 %v1079
    %1274 = vmatpush1.msra.mxu0 %v1078
    %1275 = vmatprep.subr.mxu0 %v1087
    %1276 = vmatpush1.msra.mxu0 %v1086
    %1277 = vmatprep.subr.mxu0 %v1095
    %1278 = vmatpush1.msra.mxu0 %v1094
    %1279 = vmatprep.mubr.f32.mxu0 %v589
    %1280 = vmatmul.mubr.f32.gmra.mrb[0].mxu0 %v588
    %v1281 = vpop.f32.mrb[0].mxu0
    %v1282 = vadd.f32 %v1211, %v1281
    %v1283 = vpop.f32.mrb[0].mxu0
    %v1284 = vadd.f32 %v1213, %v1283
    %1285 = vdwg.mxu0
    %1286 = vmatprep.subr.mxu0 %v593
    %1287 = vmatpush1.msra.mxu0 %v592
    %1288 = vmatprep.subr.mxu0 %v601
    %1289 = vmatpush1.msra.mxu0 %v600
    %1290 = vmatprep.subr.mxu0 %v609
    %1291 = vmatpush1.msra.mxu0 %v608
    %1292 = vmatprep.subr.mxu0 %v617
    %1293 = vmatpush1.msra.mxu0 %v616
    %1294 = vmatprep.subr.mxu0 %v625
    %1295 = vmatpush1.msra.mxu0 %v624
    %1296 = vmatprep.subr.mxu0 %v633
    %1297 = vmatpush1.msra.mxu0 %v632
    %1298 = vmatprep.subr.mxu0 %v641
    %1299 = vmatpush1.msra.mxu0 %v640
    %1300 = vmatprep.subr.mxu0 %v649
    %1301 = vmatpush1.msra.mxu0 %v648
    %1302 = vmatprep.subr.mxu0 %v657
    %1303 = vmatpush1.msra.mxu0 %v656
    %1304 = vmatprep.subr.mxu0 %v665
    %1305 = vmatpush1.msra.mxu0 %v664
    %1306 = vmatprep.subr.mxu0 %v673
    %1307 = vmatpush1.msra.mxu0 %v672
    %1308 = vmatprep.subr.mxu0 %v681
    %1309 = vmatpush1.msra.mxu0 %v680
    %1310 = vmatprep.subr.mxu0 %v689
    %1311 = vmatpush1.msra.mxu0 %v688
    %1312 = vmatprep.subr.mxu0 %v697
    %1313 = vmatpush1.msra.mxu0 %v696
    %1314 = vmatprep.subr.mxu0 %v705
    %1315 = vmatpush1.msra.mxu0 %v704
    %1316 = vmatprep.subr.mxu0 %v713
    %1317 = vmatpush1.msra.mxu0 %v712
    %1318 = vmatprep.subr.mxu0 %v721
    %1319 = vmatpush1.msra.mxu0 %v720
    %1320 = vmatprep.subr.mxu0 %v729
    %1321 = vmatpush1.msra.mxu0 %v728
    %1322 = vmatprep.subr.mxu0 %v737
    %1323 = vmatpush1.msra.mxu0 %v736
    %1324 = vmatprep.subr.mxu0 %v745
    %1325 = vmatpush1.msra.mxu0 %v744
    %1326 = vmatprep.subr.mxu0 %v753
    %1327 = vmatpush1.msra.mxu0 %v752
    %1328 = vmatprep.subr.mxu0 %v761
    %1329 = vmatpush1.msra.mxu0 %v760
    %1330 = vmatprep.subr.mxu0 %v769
    %1331 = vmatpush1.msra.mxu0 %v768
    %1332 = vmatprep.subr.mxu0 %v777
    %1333 = vmatpush1.msra.mxu0 %v776
    %1334 = vmatprep.subr.mxu0 %v785
    %1335 = vmatpush1.msra.mxu0 %v784
    %1336 = vmatprep.subr.mxu0 %v793
    %1337 = vmatpush1.msra.mxu0 %v792
    %1338 = vmatprep.subr.mxu0 %v801
    %1339 = vmatpush1.msra.mxu0 %v800
    %1340 = vmatprep.subr.mxu0 %v809
    %1341 = vmatpush1.msra.mxu0 %v808
    %1342 = vmatprep.subr.mxu0 %v817
    %1343 = vmatpush1.msra.mxu0 %v816
    %1344 = vmatprep.subr.mxu0 %v825
    %1345 = vmatpush1.msra.mxu0 %v824
    %1346 = vmatprep.subr.mxu0 %v833
    %1347 = vmatpush1.msra.mxu0 %v832
    %1348 = vmatprep.subr.mxu0 %v841
    %1349 = vmatpush1.msra.mxu0 %v840
    %1350 = vmatprep.mubr.f32.mxu0 %v587
    %1351 = vmatmul.mubr.f32.gmra.mrb[0].mxu0 %v586
    %v1352 = vpop.f32.mrb[0].mxu0
    %v1353 = vadd.f32 %v1115, %v1352
    %v1354 = vpop.f32.mrb[0].mxu0
    %v1355 = vadd.f32 %v1119, %v1354
    %1356 = vdwg.mxu0
    %1357 = vmatprep.subr.mxu0 %v849
    %1358 = vmatpush1.msra.mxu0 %v848
    %1359 = vmatprep.subr.mxu0 %v857
    %1360 = vmatpush1.msra.mxu0 %v856
    %1361 = vmatprep.subr.mxu0 %v865
    %1362 = vmatpush1.msra.mxu0 %v864
    %1363 = vmatprep.subr.mxu0 %v873
    %1364 = vmatpush1.msra.mxu0 %v872
    %1365 = vmatprep.subr.mxu0 %v881
    %1366 = vmatpush1.msra.mxu0 %v880
    %1367 = vmatprep.subr.mxu0 %v889
    %1368 = vmatpush1.msra.mxu0 %v888
    %1369 = vmatprep.subr.mxu0 %v897
    %1370 = vmatpush1.msra.mxu0 %v896
    %1371 = vmatprep.subr.mxu0 %v905
    %1372 = vmatpush1.msra.mxu0 %v904
    %1373 = vmatprep.subr.mxu0 %v913
    %1374 = vmatpush1.msra.mxu0 %v912
    %1375 = vmatprep.subr.mxu0 %v921
    %1376 = vmatpush1.msra.mxu0 %v920
    %1377 = vmatprep.subr.mxu0 %v929
    %1378 = vmatpush1.msra.mxu0 %v928
    %1379 = vmatprep.subr.mxu0 %v937
    %1380 = vmatpush1.msra.mxu0 %v936
    %1381 = vmatprep.subr.mxu0 %v945
    %1382 = vmatpush1.msra.mxu0 %v944
    %1383 = vmatprep.subr.mxu0 %v953
    %1384 = vmatpush1.msra.mxu0 %v952
    %1385 = vmatprep.subr.mxu0 %v961
    %1386 = vmatpush1.msra.mxu0 %v960
    %1387 = vmatprep.subr.mxu0 %v969
    %1388 = vmatpush1.msra.mxu0 %v968
    %1389 = vmatprep.subr.mxu0 %v977
    %1390 = vmatpush1.msra.mxu0 %v976
    %1391 = vmatprep.subr.mxu0 %v985
    %1392 = vmatpush1.msra.mxu0 %v984
    %1393 = vmatprep.subr.mxu0 %v993
    %1394 = vmatpush1.msra.mxu0 %v992
    %1395 = vmatprep.subr.mxu0 %v1001
    %1396 = vmatpush1.msra.mxu0 %v1000
    %1397 = vmatprep.subr.mxu0 %v1009
    %1398 = vmatpush1.msra.mxu0 %v1008
    %1399 = vmatprep.subr.mxu0 %v1017
    %1400 = vmatpush1.msra.mxu0 %v1016
    %1401 = vmatprep.subr.mxu0 %v1025
    %1402 = vmatpush1.msra.mxu0 %v1024
    %1403 = vmatprep.subr.mxu0 %v1033
    %1404 = vmatpush1.msra.mxu0 %v1032
    %1405 = vmatprep.subr.mxu0 %v1041
    %1406 = vmatpush1.msra.mxu0 %v1040
    %1407 = vmatprep.subr.mxu0 %v1049
    %1408 = vmatpush1.msra.mxu0 %v1048
    %1409 = vmatprep.subr.mxu0 %v1057
    %1410 = vmatpush1.msra.mxu0 %v1056
    %1411 = vmatprep.subr.mxu0 %v1065
    %1412 = vmatpush1.msra.mxu0 %v1064
    %1413 = vmatprep.subr.mxu0 %v1073
    %1414 = vmatpush1.msra.mxu0 %v1072
    %1415 = vmatprep.subr.mxu0 %v1081
    %1416 = vmatpush1.msra.mxu0 %v1080
    %1417 = vmatprep.subr.mxu0 %v1089
    %1418 = vmatpush1.msra.mxu0 %v1088
    %1419 = vmatprep.subr.mxu0 %v1097
    %1420 = vmatpush1.msra.mxu0 %v1096
    %1421 = vmatprep.mubr.f32.mxu0 %v589
    %1422 = vmatmul.mubr.f32.gmra.mrb[0].mxu0 %v588
    %v1423 = vpop.f32.mrb[0].mxu0
    %v1424 = vadd.f32 %v1353, %v1423
    %v1425 = vpop.f32.mrb[0].mxu0
    %v1426 = vadd.f32 %v1355, %v1425
    %1427 = vdwg.mxu0
    %1428 = vmatprep.subr.mxu0 %v595
    %1429 = vmatpush1.msra.mxu0 %v594
    %1430 = vmatprep.subr.mxu0 %v603
    %1431 = vmatpush1.msra.mxu0 %v602
    %1432 = vmatprep.subr.mxu0 %v611
    %1433 = vmatpush1.msra.mxu0 %v610
    %1434 = vmatprep.subr.mxu0 %v619
    %1435 = vmatpush1.msra.mxu0 %v618
    %1436 = vmatprep.subr.mxu0 %v627
    %1437 = vmatpush1.msra.mxu0 %v626
    %1438 = vmatprep.subr.mxu0 %v635
    %1439 = vmatpush1.msra.mxu0 %v634
    %1440 = vmatprep.subr.mxu0 %v643
    %1441 = vmatpush1.msra.mxu0 %v642
    %1442 = vmatprep.subr.mxu0 %v651
    %1443 = vmatpush1.msra.mxu0 %v650
    %1444 = vmatprep.subr.mxu0 %v659
    %1445 = vmatpush1.msra.mxu0 %v658
    %1446 = vmatprep.subr.mxu0 %v667
    %1447 = vmatpush1.msra.mxu0 %v666
    %1448 = vmatprep.subr.mxu0 %v675
    %1449 = vmatpush1.msra.mxu0 %v674
    %1450 = vmatprep.subr.mxu0 %v683
    %1451 = vmatpush1.msra.mxu0 %v682
    %1452 = vmatprep.subr.mxu0 %v691
    %1453 = vmatpush1.msra.mxu0 %v690
    %1454 = vmatprep.subr.mxu0 %v699
    %1455 = vmatpush1.msra.mxu0 %v698
    %1456 = vmatprep.subr.mxu0 %v707
    %1457 = vmatpush1.msra.mxu0 %v706
    %1458 = vmatprep.subr.mxu0 %v715
    %1459 = vmatpush1.msra.mxu0 %v714
    %1460 = vmatprep.subr.mxu0 %v723
    %1461 = vmatpush1.msra.mxu0 %v722
    %1462 = vmatprep.subr.mxu0 %v731
    %1463 = vmatpush1.msra.mxu0 %v730
    %1464 = vmatprep.subr.mxu0 %v739
    %1465 = vmatpush1.msra.mxu0 %v738
    %1466 = vmatprep.subr.mxu0 %v747
    %1467 = vmatpush1.msra.mxu0 %v746
    %1468 = vmatprep.subr.mxu0 %v755
    %1469 = vmatpush1.msra.mxu0 %v754
    %1470 = vmatprep.subr.mxu0 %v763
    %1471 = vmatpush1.msra.mxu0 %v762
    %1472 = vmatprep.subr.mxu0 %v771
    %1473 = vmatpush1.msra.mxu0 %v770
    %1474 = vmatprep.subr.mxu0 %v779
    %1475 = vmatpush1.msra.mxu0 %v778
    %1476 = vmatprep.subr.mxu0 %v787
    %1477 = vmatpush1.msra.mxu0 %v786
    %1478 = vmatprep.subr.mxu0 %v795
    %1479 = vmatpush1.msra.mxu0 %v794
    %1480 = vmatprep.subr.mxu0 %v803
    %1481 = vmatpush1.msra.mxu0 %v802
    %1482 = vmatprep.subr.mxu0 %v811
    %1483 = vmatpush1.msra.mxu0 %v810
    %1484 = vmatprep.subr.mxu0 %v819
    %1485 = vmatpush1.msra.mxu0 %v818
    %1486 = vmatprep.subr.mxu0 %v827
    %1487 = vmatpush1.msra.mxu0 %v826
    %1488 = vmatprep.subr.mxu0 %v835
    %1489 = vmatpush1.msra.mxu0 %v834
    %1490 = vmatprep.subr.mxu0 %v843
    %1491 = vmatpush1.msra.mxu0 %v842
    %1492 = vmatprep.mubr.f32.mxu0 %v587
    %1493 = vmatmul.mubr.f32.gmra.mrb[0].mxu0 %v586
    %v1494 = vpop.f32.mrb[0].mxu0
    %v1495 = vadd.f32 %v1123, %v1494
    %v1496 = vpop.f32.mrb[0].mxu0
    %v1497 = vadd.f32 %v1127, %v1496
    %1498 = vdwg.mxu0
    %1499 = vmatprep.subr.mxu0 %v851
    %1500 = vmatpush1.msra.mxu0 %v850
    %1501 = vmatprep.subr.mxu0 %v859
    %1502 = vmatpush1.msra.mxu0 %v858
    %1503 = vmatprep.subr.mxu0 %v867
    %1504 = vmatpush1.msra.mxu0 %v866
    %1505 = vmatprep.subr.mxu0 %v875
    %1506 = vmatpush1.msra.mxu0 %v874
    %1507 = vmatprep.subr.mxu0 %v883
    %1508 = vmatpush1.msra.mxu0 %v882
    %1509 = vmatprep.subr.mxu0 %v891
    %1510 = vmatpush1.msra.mxu0 %v890
    %1511 = vmatprep.subr.mxu0 %v899
    %1512 = vmatpush1.msra.mxu0 %v898
    %1513 = vmatprep.subr.mxu0 %v907
    %1514 = vmatpush1.msra.mxu0 %v906
    %1515 = vmatprep.subr.mxu0 %v915
    %1516 = vmatpush1.msra.mxu0 %v914
    %1517 = vmatprep.subr.mxu0 %v923
    %1518 = vmatpush1.msra.mxu0 %v922
    %1519 = vmatprep.subr.mxu0 %v931
    %1520 = vmatpush1.msra.mxu0 %v930
    %1521 = vmatprep.subr.mxu0 %v939
    %1522 = vmatpush1.msra.mxu0 %v938
    %1523 = vmatprep.subr.mxu0 %v947
    %1524 = vmatpush1.msra.mxu0 %v946
    %1525 = vmatprep.subr.mxu0 %v955
    %1526 = vmatpush1.msra.mxu0 %v954
    %1527 = vmatprep.subr.mxu0 %v963
    %1528 = vmatpush1.msra.mxu0 %v962
    %1529 = vmatprep.subr.mxu0 %v971
    %1530 = vmatpush1.msra.mxu0 %v970
    %1531 = vmatprep.subr.mxu0 %v979
    %1532 = vmatpush1.msra.mxu0 %v978
    %1533 = vmatprep.subr.mxu0 %v987
    %1534 = vmatpush1.msra.mxu0 %v986
    %1535 = vmatprep.subr.mxu0 %v995
    %1536 = vmatpush1.msra.mxu0 %v994
    %1537 = vmatprep.subr.mxu0 %v1003
    %1538 = vmatpush1.msra.mxu0 %v1002
    %1539 = vmatprep.subr.mxu0 %v1011
    %1540 = vmatpush1.msra.mxu0 %v1010
    %1541 = vmatprep.subr.mxu0 %v1019
    %1542 = vmatpush1.msra.mxu0 %v1018
    %1543 = vmatprep.subr.mxu0 %v1027
    %1544 = vmatpush1.msra.mxu0 %v1026
    %1545 = vmatprep.subr.mxu0 %v1035
    %1546 = vmatpush1.msra.mxu0 %v1034
    %1547 = vmatprep.subr.mxu0 %v1043
    %1548 = vmatpush1.msra.mxu0 %v1042
    %1549 = vmatprep.subr.mxu0 %v1051
    %1550 = vmatpush1.msra.mxu0 %v1050
    %1551 = vmatprep.subr.mxu0 %v1059
    %1552 = vmatpush1.msra.mxu0 %v1058
    %1553 = vmatprep.subr.mxu0 %v1067
    %1554 = vmatpush1.msra.mxu0 %v1066
    %1555 = vmatprep.subr.mxu0 %v1075
    %1556 = vmatpush1.msra.mxu0 %v1074
    %1557 = vmatprep.subr.mxu0 %v1083
    %1558 = vmatpush1.msra.mxu0 %v1082
    %1559 = vmatprep.subr.mxu0 %v1091
    %1560 = vmatpush1.msra.mxu0 %v1090
    %1561 = vmatprep.subr.mxu0 %v1099
    %1562 = vmatpush1.msra.mxu0 %v1098
    %1563 = vmatprep.mubr.f32.mxu0 %v589
    %1564 = vmatmul.mubr.f32.gmra.mrb[0].mxu0 %v588
    %v1565 = vpop.f32.mrb[0].mxu0
    %v1566 = vadd.f32 %v1495, %v1565
    %v1567 = vpop.f32.mrb[0].mxu0
    %v1568 = vadd.f32 %v1497, %v1567
    %1569 = vdwg.mxu0
    %1570 = vmatprep.subr.mxu0 %v597
    %1571 = vmatpush1.msra.mxu0 %v596
    %1572 = vmatprep.subr.mxu0 %v605
    %1573 = vmatpush1.msra.mxu0 %v604
    %1574 = vmatprep.subr.mxu0 %v613
    %1575 = vmatpush1.msra.mxu0 %v612
    %1576 = vmatprep.subr.mxu0 %v621
    %1577 = vmatpush1.msra.mxu0 %v620
    %1578 = vmatprep.subr.mxu0 %v629
    %1579 = vmatpush1.msra.mxu0 %v628
    %1580 = vmatprep.subr.mxu0 %v637
    %1581 = vmatpush1.msra.mxu0 %v636
    %1582 = vmatprep.subr.mxu0 %v645
    %1583 = vmatpush1.msra.mxu0 %v644
    %1584 = vmatprep.subr.mxu0 %v653
    %1585 = vmatpush1.msra.mxu0 %v652
    %1586 = vmatprep.subr.mxu0 %v661
    %1587 = vmatpush1.msra.mxu0 %v660
    %1588 = vmatprep.subr.mxu0 %v669
    %1589 = vmatpush1.msra.mxu0 %v668
    %1590 = vmatprep.subr.mxu0 %v677
    %1591 = vmatpush1.msra.mxu0 %v676
    %1592 = vmatprep.subr.mxu0 %v685
    %1593 = vmatpush1.msra.mxu0 %v684
    %1594 = vmatprep.subr.mxu0 %v693
    %1595 = vmatpush1.msra.mxu0 %v692
    %1596 = vmatprep.subr.mxu0 %v701
    %1597 = vmatpush1.msra.mxu0 %v700
    %1598 = vmatprep.subr.mxu0 %v709
    %1599 = vmatpush1.msra.mxu0 %v708
    %1600 = vmatprep.subr.mxu0 %v717
    %1601 = vmatpush1.msra.mxu0 %v716
    %1602 = vmatprep.subr.mxu0 %v725
    %1603 = vmatpush1.msra.mxu0 %v724
    %1604 = vmatprep.subr.mxu0 %v733
    %1605 = vmatpush1.msra.mxu0 %v732
    %1606 = vmatprep.subr.mxu0 %v741
    %1607 = vmatpush1.msra.mxu0 %v740
    %1608 = vmatprep.subr.mxu0 %v749
    %1609 = vmatpush1.msra.mxu0 %v748
    %1610 = vmatprep.subr.mxu0 %v757
    %1611 = vmatpush1.msra.mxu0 %v756
    %1612 = vmatprep.subr.mxu0 %v765
    %1613 = vmatpush1.msra.mxu0 %v764
    %1614 = vmatprep.subr.mxu0 %v773
    %1615 = vmatpush1.msra.mxu0 %v772
    %1616 = vmatprep.subr.mxu0 %v781
    %1617 = vmatpush1.msra.mxu0 %v780
    %1618 = vmatprep.subr.mxu0 %v789
    %1619 = vmatpush1.msra.mxu0 %v788
    %1620 = vmatprep.subr.mxu0 %v797
    %1621 = vmatpush1.msra.mxu0 %v796
    %1622 = vmatprep.subr.mxu0 %v805
    %1623 = vmatpush1.msra.mxu0 %v804
    %1624 = vmatprep.subr.mxu0 %v813
    %1625 = vmatpush1.msra.mxu0 %v812
    %1626 = vmatprep.subr.mxu0 %v821
    %1627 = vmatpush1.msra.mxu0 %v820
    %1628 = vmatprep.subr.mxu0 %v829
    %1629 = vmatpush1.msra.mxu0 %v828
    %1630 = vmatprep.subr.mxu0 %v837
    %1631 = vmatpush1.msra.mxu0 %v836
    %1632 = vmatprep.subr.mxu0 %v845
    %1633 = vmatpush1.msra.mxu0 %v844
    %1634 = vmatprep.mubr.f32.mxu0 %v587
    %1635 = vmatmul.mubr.f32.gmra.mrb[0].mxu0 %v586
    %v1636 = vpop.f32.mrb[0].mxu0
    %v1637 = vadd.f32 %v1131, %v1636
    %v1638 = vpop.f32.mrb[0].mxu0
    %v1639 = vadd.f32 %v1135, %v1638
    %1640 = vdwg.mxu0
    %1641 = vmatprep.subr.mxu0 %v853
    %1642 = vmatpush1.msra.mxu0 %v852
    %1643 = vmatprep.subr.mxu0 %v861
    %1644 = vmatpush1.msra.mxu0 %v860
    %1645 = vmatprep.subr.mxu0 %v869
    %1646 = vmatpush1.msra.mxu0 %v868
    %1647 = vmatprep.subr.mxu0 %v877
    %1648 = vmatpush1.msra.mxu0 %v876
    %1649 = vmatprep.subr.mxu0 %v885
    %1650 = vmatpush1.msra.mxu0 %v884
    %1651 = vmatprep.subr.mxu0 %v893
    %1652 = vmatpush1.msra.mxu0 %v892
    %1653 = vmatprep.subr.mxu0 %v901
    %1654 = vmatpush1.msra.mxu0 %v900
    %1655 = vmatprep.subr.mxu0 %v909
    %1656 = vmatpush1.msra.mxu0 %v908
    %1657 = vmatprep.subr.mxu0 %v917
    %1658 = vmatpush1.msra.mxu0 %v916
    %1659 = vmatprep.subr.mxu0 %v925
    %1660 = vmatpush1.msra.mxu0 %v924
    %1661 = vmatprep.subr.mxu0 %v933
    %1662 = vmatpush1.msra.mxu0 %v932
    %1663 = vmatprep.subr.mxu0 %v941
    %1664 = vmatpush1.msra.mxu0 %v940
    %1665 = vmatprep.subr.mxu0 %v949
    %1666 = vmatpush1.msra.mxu0 %v948
    %1667 = vmatprep.subr.mxu0 %v957
    %1668 = vmatpush1.msra.mxu0 %v956
    %1669 = vmatprep.subr.mxu0 %v965
    %1670 = vmatpush1.msra.mxu0 %v964
    %1671 = vmatprep.subr.mxu0 %v973
    %1672 = vmatpush1.msra.mxu0 %v972
    %1673 = vmatprep.subr.mxu0 %v981
    %1674 = vmatpush1.msra.mxu0 %v980
    %1675 = vmatprep.subr.mxu0 %v989
    %1676 = vmatpush1.msra.mxu0 %v988
    %1677 = vmatprep.subr.mxu0 %v997
    %1678 = vmatpush1.msra.mxu0 %v996
    %1679 = vmatprep.subr.mxu0 %v1005
    %1680 = vmatpush1.msra.mxu0 %v1004
    %1681 = vmatprep.subr.mxu0 %v1013
    %1682 = vmatpush1.msra.mxu0 %v1012
    %1683 = vmatprep.subr.mxu0 %v1021
    %1684 = vmatpush1.msra.mxu0 %v1020
    %1685 = vmatprep.subr.mxu0 %v1029
    %1686 = vmatpush1.msra.mxu0 %v1028
    %1687 = vmatprep.subr.mxu0 %v1037
    %1688 = vmatpush1.msra.mxu0 %v1036
    %1689 = vmatprep.subr.mxu0 %v1045
    %1690 = vmatpush1.msra.mxu0 %v1044
    %1691 = vmatprep.subr.mxu0 %v1053
    %1692 = vmatpush1.msra.mxu0 %v1052
    %1693 = vmatprep.subr.mxu0 %v1061
    %1694 = vmatpush1.msra.mxu0 %v1060
    %1695 = vmatprep.subr.mxu0 %v1069
    %1696 = vmatpush1.msra.mxu0 %v1068
    %1697 = vmatprep.subr.mxu0 %v1077
    %1698 = vmatpush1.msra.mxu0 %v1076
    %1699 = vmatprep.subr.mxu0 %v1085
    %1700 = vmatpush1.msra.mxu0 %v1084
    %1701 = vmatprep.subr.mxu0 %v1093
    %1702 = vmatpush1.msra.mxu0 %v1092
    %1703 = vmatprep.subr.mxu0 %v1101
    %1704 = vmatpush1.msra.mxu0 %v1100
    %1705 = vmatprep.mubr.f32.mxu0 %v589
    %1706 = vmatmul.mubr.f32.gmra.mrb[0].mxu0 %v588
    %v1707 = vpop.f32.mrb[0].mxu0
    %v1708 = vadd.f32 %v1637, %v1707
    %v1709 = vpop.f32.mrb[0].mxu0
    %v1710 = vadd.f32 %v1639, %v1709
    %1711 = vdwg.mxu0
    %v1712 = vmax.f32 %v1282, 0.0
    %v1713 = vmax.f32 %v1284, 0.0
    %v1714 = vmax.f32 %v1424, 0.0
    %v1715 = vmax.f32 %v1426, 0.0
    %v1716 = vmax.f32 %v1566, 0.0
    %v1717 = vmax.f32 %v1568, 0.0
    %v1718 = vmax.f32 %v1708, 0.0
    %v1719 = vmax.f32 %v1710, 0.0
    %v1720 = vld [vmem:[#allocation12] sm:$0xff]
    %v1721 = vld [vmem:[#allocation12 + $0x8] sm:$0xff]
    %v1722 = vld [vmem:[#allocation12 + $0x10] sm:$0xff]
    %v1723 = vld [vmem:[#allocation12 + $0x18] sm:$0xff]
    %v1724 = vld [vmem:[#allocation12 + $0x20] sm:$0xff]
    %v1725 = vld [vmem:[#allocation12 + $0x28] sm:$0xff]
    %v1726 = vld [vmem:[#allocation12 + $0x30] sm:$0xff]
    %v1727 = vld [vmem:[#allocation12 + $0x38] sm:$0xff]
    %v1728 = vld [vmem:[#allocation12 + $0x40] sm:$0xff]
    %v1729 = vld [vmem:[#allocation12 + $0x48] sm:$0xff]
    %v1730 = vld [vmem:[#allocation12 + $0x50] sm:$0xff]
    %v1731 = vld [vmem:[#allocation12 + $0x58] sm:$0xff]
    %v1732 = vld [vmem:[#allocation12 + $0x60] sm:$0xff]
    %v1733 = vld [vmem:[#allocation12 + $0x68] sm:$0xff]
    %v1734 = vld [vmem:[#allocation12 + $0x70] sm:$0xff]
    %v1735 = vld [vmem:[#allocation12 + $0x78] sm:$0xff]
    %v1736 = vld [vmem:[#allocation12 + $0x80] sm:$0xff]
    %v1737 = vld [vmem:[#allocation12 + $0x88] sm:$0xff]
    %v1738 = vld [vmem:[#allocation12 + $0x90] sm:$0xff]
    %v1739 = vld [vmem:[#allocation12 + $0x98] sm:$0xff]
    %v1740 = vld [vmem:[#allocation12 + $0xa0] sm:$0xff]
    %v1741 = vld [vmem:[#allocation12 + $0xa8] sm:$0xff]
    %v1742 = vld [vmem:[#allocation12 + $0xb0] sm:$0xff]
    %v1743 = vld [vmem:[#allocation12 + $0xb8] sm:$0xff]
    %v1744 = vld [vmem:[#allocation12 + $0xc0] sm:$0xff]
    %v1745 = vld [vmem:[#allocation12 + $0xc8] sm:$0xff]
    %v1746 = vld [vmem:[#allocation12 + $0xd0] sm:$0xff]
    %v1747 = vld [vmem:[#allocation12 + $0xd8] sm:$0xff]
    %v1748 = vld [vmem:[#allocation12 + $0xe0] sm:$0xff]
    %v1749 = vld [vmem:[#allocation12 + $0xe8] sm:$0xff]
    %v1750 = vld [vmem:[#allocation12 + $0xf0] sm:$0xff]
    %v1751 = vld [vmem:[#allocation12 + $0xf8] sm:$0xff]
    %v1752 = vld [vmem:[#allocation12 + $0x100] sm:$0xff]
    %v1753 = vld [vmem:[#allocation12 + $0x108] sm:$0xff]
    %v1754 = vld [vmem:[#allocation12 + $0x110] sm:$0xff]
    %v1755 = vld [vmem:[#allocation12 + $0x118] sm:$0xff]
    %v1756 = vld [vmem:[#allocation12 + $0x120] sm:$0xff]
    %v1757 = vld [vmem:[#allocation12 + $0x128] sm:$0xff]
    %v1758 = vld [vmem:[#allocation12 + $0x130] sm:$0xff]
    %v1759 = vld [vmem:[#allocation12 + $0x138] sm:$0xff]
    %v1760 = vld [vmem:[#allocation12 + $0x140] sm:$0xff]
    %v1761 = vld [vmem:[#allocation12 + $0x148] sm:$0xff]
    %v1762 = vld [vmem:[#allocation12 + $0x150] sm:$0xff]
    %v1763 = vld [vmem:[#allocation12 + $0x158] sm:$0xff]
    %v1764 = vld [vmem:[#allocation12 + $0x160] sm:$0xff]
    %v1765 = vld [vmem:[#allocation12 + $0x168] sm:$0xff]
    %v1766 = vld [vmem:[#allocation12 + $0x170] sm:$0xff]
    %v1767 = vld [vmem:[#allocation12 + $0x178] sm:$0xff]
    %v1768 = vld [vmem:[#allocation12 + $0x180] sm:$0xff]
    %v1769 = vld [vmem:[#allocation12 + $0x188] sm:$0xff]
    %v1770 = vld [vmem:[#allocation12 + $0x190] sm:$0xff]
    %v1771 = vld [vmem:[#allocation12 + $0x198] sm:$0xff]
    %v1772 = vld [vmem:[#allocation12 + $0x1a0] sm:$0xff]
    %v1773 = vld [vmem:[#allocation12 + $0x1a8] sm:$0xff]
    %v1774 = vld [vmem:[#allocation12 + $0x1b0] sm:$0xff]
    %v1775 = vld [vmem:[#allocation12 + $0x1b8] sm:$0xff]
    %v1776 = vld [vmem:[#allocation12 + $0x1c0] sm:$0xff]
    %v1777 = vld [vmem:[#allocation12 + $0x1c8] sm:$0xff]
    %v1778 = vld [vmem:[#allocation12 + $0x1d0] sm:$0xff]
    %v1779 = vld [vmem:[#allocation12 + $0x1d8] sm:$0xff]
    %v1780 = vld [vmem:[#allocation12 + $0x1e0] sm:$0xff]
    %v1781 = vld [vmem:[#allocation12 + $0x1e8] sm:$0xff]
    %v1782 = vld [vmem:[#allocation12 + $0x1f0] sm:$0xff]
    %v1783 = vld [vmem:[#allocation12 + $0x1f8] sm:$0xff]
    %v1784 = vld [vmem:[#allocation12 + $0x200] sm:$0xff]
    %v1785 = vld [vmem:[#allocation12 + $0x208] sm:$0xff]
    %v1786 = vld [vmem:[#allocation12 + $0x210] sm:$0xff]
    %v1787 = vld [vmem:[#allocation12 + $0x218] sm:$0xff]
    %v1788 = vld [vmem:[#allocation12 + $0x220] sm:$0xff]
    %v1789 = vld [vmem:[#allocation12 + $0x228] sm:$0xff]
    %v1790 = vld [vmem:[#allocation12 + $0x230] sm:$0xff]
    %v1791 = vld [vmem:[#allocation12 + $0x238] sm:$0xff]
    %v1792 = vld [vmem:[#allocation12 + $0x240] sm:$0xff]
    %v1793 = vld [vmem:[#allocation12 + $0x248] sm:$0xff]
    %v1794 = vld [vmem:[#allocation12 + $0x250] sm:$0xff]
    %v1795 = vld [vmem:[#allocation12 + $0x258] sm:$0xff]
    %v1796 = vld [vmem:[#allocation12 + $0x260] sm:$0xff]
    %v1797 = vld [vmem:[#allocation12 + $0x268] sm:$0xff]
    %v1798 = vld [vmem:[#allocation12 + $0x270] sm:$0xff]
    %v1799 = vld [vmem:[#allocation12 + $0x278] sm:$0xff]
    %v1800 = vld [vmem:[#allocation12 + $0x280] sm:$0xff]
    %v1801 = vld [vmem:[#allocation12 + $0x288] sm:$0xff]
    %v1802 = vld [vmem:[#allocation12 + $0x290] sm:$0xff]
    %v1803 = vld [vmem:[#allocation12 + $0x298] sm:$0xff]
    %v1804 = vld [vmem:[#allocation12 + $0x2a0] sm:$0xff]
    %v1805 = vld [vmem:[#allocation12 + $0x2a8] sm:$0xff]
    %v1806 = vld [vmem:[#allocation12 + $0x2b0] sm:$0xff]
    %v1807 = vld [vmem:[#allocation12 + $0x2b8] sm:$0xff]
    %v1808 = vld [vmem:[#allocation12 + $0x2c0] sm:$0xff]
    %v1809 = vld [vmem:[#allocation12 + $0x2c8] sm:$0xff]
    %v1810 = vld [vmem:[#allocation12 + $0x2d0] sm:$0xff]
    %v1811 = vld [vmem:[#allocation12 + $0x2d8] sm:$0xff]
    %v1812 = vld [vmem:[#allocation12 + $0x2e0] sm:$0xff]
    %v1813 = vld [vmem:[#allocation12 + $0x2e8] sm:$0xff]
    %v1814 = vld [vmem:[#allocation12 + $0x2f0] sm:$0xff]
    %v1815 = vld [vmem:[#allocation12 + $0x2f8] sm:$0xff]
    %v1816 = vld [vmem:[#allocation12 + $0x300] sm:$0xff]
    %v1817 = vld [vmem:[#allocation12 + $0x308] sm:$0xff]
    %v1818 = vld [vmem:[#allocation12 + $0x310] sm:$0xff]
    %v1819 = vld [vmem:[#allocation12 + $0x318] sm:$0xff]
    %v1820 = vld [vmem:[#allocation12 + $0x320] sm:$0xff]
    %v1821 = vld [vmem:[#allocation12 + $0x328] sm:$0xff]
    %v1822 = vld [vmem:[#allocation12 + $0x330] sm:$0xff]
    %v1823 = vld [vmem:[#allocation12 + $0x338] sm:$0xff]
    %v1824 = vld [vmem:[#allocation12 + $0x340] sm:$0xff]
    %v1825 = vld [vmem:[#allocation12 + $0x348] sm:$0xff]
    %v1826 = vld [vmem:[#allocation12 + $0x350] sm:$0xff]
    %v1827 = vld [vmem:[#allocation12 + $0x358] sm:$0xff]
    %v1828 = vld [vmem:[#allocation12 + $0x360] sm:$0xff]
    %v1829 = vld [vmem:[#allocation12 + $0x368] sm:$0xff]
    %v1830 = vld [vmem:[#allocation12 + $0x370] sm:$0xff]
    %v1831 = vld [vmem:[#allocation12 + $0x378] sm:$0xff]
    %v1832 = vld [vmem:[#allocation12 + $0x380] sm:$0xff]
    %v1833 = vld [vmem:[#allocation12 + $0x388] sm:$0xff]
    %v1834 = vld [vmem:[#allocation12 + $0x390] sm:$0xff]
    %v1835 = vld [vmem:[#allocation12 + $0x398] sm:$0xff]
    %v1836 = vld [vmem:[#allocation12 + $0x3a0] sm:$0xff]
    %v1837 = vld [vmem:[#allocation12 + $0x3a8] sm:$0xff]
    %v1838 = vld [vmem:[#allocation12 + $0x3b0] sm:$0xff]
    %v1839 = vld [vmem:[#allocation12 + $0x3b8] sm:$0xff]
    %v1840 = vld [vmem:[#allocation12 + $0x3c0] sm:$0xff]
    %v1841 = vld [vmem:[#allocation12 + $0x3c8] sm:$0xff]
    %v1842 = vld [vmem:[#allocation12 + $0x3d0] sm:$0xff]
    %v1843 = vld [vmem:[#allocation12 + $0x3d8] sm:$0xff]
    %v1844 = vld [vmem:[#allocation12 + $0x3e0] sm:$0xff]
    %v1845 = vld [vmem:[#allocation12 + $0x3e8] sm:$0xff]
    %v1846 = vld [vmem:[#allocation12 + $0x3f0] sm:$0xff]
    %v1847 = vld [vmem:[#allocation12 + $0x3f8] sm:$0xff]
    %v1848 = vld [vmem:[#allocation13] sm:$0x1]
    %v1850 = vlaneseq
    %v1851 = vshrl.u32 %v1850, 7
    %v1852 = vsub.s32 0, %v1851
    %v1853 = vrot.slane %v1848, %v1852
    %1855 = vmatprep.subr.mxu0 0.0
    %1856 = vmatpush1.msra.mxu0 %v1720
    %1857 = vmatprep.subr.mxu0 0.0
    %1858 = vmatpush1.msra.mxu0 %v1721
    %1859 = vmatprep.subr.mxu0 0.0
    %1860 = vmatpush1.msra.mxu0 %v1722
    %1861 = vmatprep.subr.mxu0 0.0
    %1862 = vmatpush1.msra.mxu0 %v1723
    %1863 = vmatprep.subr.mxu0 0.0
    %1864 = vmatpush1.msra.mxu0 %v1724
    %1865 = vmatprep.subr.mxu0 0.0
    %1866 = vmatpush1.msra.mxu0 %v1725
    %1867 = vmatprep.subr.mxu0 0.0
    %1868 = vmatpush1.msra.mxu0 %v1726
    %1869 = vmatprep.subr.mxu0 0.0
    %1870 = vmatpush1.msra.mxu0 %v1727
    %1871 = vmatprep.subr.mxu0 0.0
    %1872 = vmatpush1.msra.mxu0 %v1728
    %1873 = vmatprep.subr.mxu0 0.0
    %1874 = vmatpush1.msra.mxu0 %v1729
    %1875 = vmatprep.subr.mxu0 0.0
    %1876 = vmatpush1.msra.mxu0 %v1730
    %1877 = vmatprep.subr.mxu0 0.0
    %1878 = vmatpush1.msra.mxu0 %v1731
    %1879 = vmatprep.subr.mxu0 0.0
    %1880 = vmatpush1.msra.mxu0 %v1732
    %1881 = vmatprep.subr.mxu0 0.0
    %1882 = vmatpush1.msra.mxu0 %v1733
    %1883 = vmatprep.subr.mxu0 0.0
    %1884 = vmatpush1.msra.mxu0 %v1734
    %1885 = vmatprep.subr.mxu0 0.0
    %1886 = vmatpush1.msra.mxu0 %v1735
    %1887 = vmatprep.subr.mxu0 0.0
    %1888 = vmatpush1.msra.mxu0 %v1736
    %1889 = vmatprep.subr.mxu0 0.0
    %1890 = vmatpush1.msra.mxu0 %v1737
    %1891 = vmatprep.subr.mxu0 0.0
    %1892 = vmatpush1.msra.mxu0 %v1738
    %1893 = vmatprep.subr.mxu0 0.0
    %1894 = vmatpush1.msra.mxu0 %v1739
    %1895 = vmatprep.subr.mxu0 0.0
    %1896 = vmatpush1.msra.mxu0 %v1740
    %1897 = vmatprep.subr.mxu0 0.0
    %1898 = vmatpush1.msra.mxu0 %v1741
    %1899 = vmatprep.subr.mxu0 0.0
    %1900 = vmatpush1.msra.mxu0 %v1742
    %1901 = vmatprep.subr.mxu0 0.0
    %1902 = vmatpush1.msra.mxu0 %v1743
    %1903 = vmatprep.subr.mxu0 0.0
    %1904 = vmatpush1.msra.mxu0 %v1744
    %1905 = vmatprep.subr.mxu0 0.0
    %1906 = vmatpush1.msra.mxu0 %v1745
    %1907 = vmatprep.subr.mxu0 0.0
    %1908 = vmatpush1.msra.mxu0 %v1746
    %1909 = vmatprep.subr.mxu0 0.0
    %1910 = vmatpush1.msra.mxu0 %v1747
    %1911 = vmatprep.subr.mxu0 0.0
    %1912 = vmatpush1.msra.mxu0 %v1748
    %1913 = vmatprep.subr.mxu0 0.0
    %1914 = vmatpush1.msra.mxu0 %v1749
    %1915 = vmatprep.subr.mxu0 0.0
    %1916 = vmatpush1.msra.mxu0 %v1750
    %1917 = vmatprep.subr.mxu0 0.0
    %1918 = vmatpush1.msra.mxu0 %v1751
    %1919 = vmatprep.mubr.f32.mxu0 %v1713
    %1920 = vmatmul.mubr.f32.gmra.mrb[0].mxu0 %v1712
    %v1921 = vpop.f32.mrb[0].mxu0
    %v1922 = vadd.f32 %v1853, %v1921
    %v1923 = vpop.f32.mrb[0].mxu0
    %1924 = vdwg.mxu0
    %1925 = vmatprep.subr.mxu0 0.0
    %1926 = vmatpush1.msra.mxu0 %v1752
    %1927 = vmatprep.subr.mxu0 0.0
    %1928 = vmatpush1.msra.mxu0 %v1753
    %1929 = vmatprep.subr.mxu0 0.0
    %1930 = vmatpush1.msra.mxu0 %v1754
    %1931 = vmatprep.subr.mxu0 0.0
    %1932 = vmatpush1.msra.mxu0 %v1755
    %1933 = vmatprep.subr.mxu0 0.0
    %1934 = vmatpush1.msra.mxu0 %v1756
    %1935 = vmatprep.subr.mxu0 0.0
    %1936 = vmatpush1.msra.mxu0 %v1757
    %1937 = vmatprep.subr.mxu0 0.0
    %1938 = vmatpush1.msra.mxu0 %v1758
    %1939 = vmatprep.subr.mxu0 0.0
    %1940 = vmatpush1.msra.mxu0 %v1759
    %1941 = vmatprep.subr.mxu0 0.0
    %1942 = vmatpush1.msra.mxu0 %v1760
    %1943 = vmatprep.subr.mxu0 0.0
    %1944 = vmatpush1.msra.mxu0 %v1761
    %1945 = vmatprep.subr.mxu0 0.0
    %1946 = vmatpush1.msra.mxu0 %v1762
    %1947 = vmatprep.subr.mxu0 0.0
    %1948 = vmatpush1.msra.mxu0 %v1763
    %1949 = vmatprep.subr.mxu0 0.0
    %1950 = vmatpush1.msra.mxu0 %v1764
    %1951 = vmatprep.subr.mxu0 0.0
    %1952 = vmatpush1.msra.mxu0 %v1765
    %1953 = vmatprep.subr.mxu0 0.0
    %1954 = vmatpush1.msra.mxu0 %v1766
    %1955 = vmatprep.subr.mxu0 0.0
    %1956 = vmatpush1.msra.mxu0 %v1767
    %1957 = vmatprep.subr.mxu0 0.0
    %1958 = vmatpush1.msra.mxu0 %v1768
    %1959 = vmatprep.subr.mxu0 0.0
    %1960 = vmatpush1.msra.mxu0 %v1769
    %1961 = vmatprep.subr.mxu0 0.0
    %1962 = vmatpush1.msra.mxu0 %v1770
    %1963 = vmatprep.subr.mxu0 0.0
    %1964 = vmatpush1.msra.mxu0 %v1771
    %1965 = vmatprep.subr.mxu0 0.0
    %1966 = vmatpush1.msra.mxu0 %v1772
    %1967 = vmatprep.subr.mxu0 0.0
    %1968 = vmatpush1.msra.mxu0 %v1773
    %1969 = vmatprep.subr.mxu0 0.0
    %1970 = vmatpush1.msra.mxu0 %v1774
    %1971 = vmatprep.subr.mxu0 0.0
    %1972 = vmatpush1.msra.mxu0 %v1775
    %1973 = vmatprep.subr.mxu0 0.0
    %1974 = vmatpush1.msra.mxu0 %v1776
    %1975 = vmatprep.subr.mxu0 0.0
    %1976 = vmatpush1.msra.mxu0 %v1777
    %1977 = vmatprep.subr.mxu0 0.0
    %1978 = vmatpush1.msra.mxu0 %v1778
    %1979 = vmatprep.subr.mxu0 0.0
    %1980 = vmatpush1.msra.mxu0 %v1779
    %1981 = vmatprep.subr.mxu0 0.0
    %1982 = vmatpush1.msra.mxu0 %v1780
    %1983 = vmatprep.subr.mxu0 0.0
    %1984 = vmatpush1.msra.mxu0 %v1781
    %1985 = vmatprep.subr.mxu0 0.0
    %1986 = vmatpush1.msra.mxu0 %v1782
    %1987 = vmatprep.subr.mxu0 0.0
    %1988 = vmatpush1.msra.mxu0 %v1783
    %1989 = vmatprep.mubr.f32.mxu0 %v1715
    %1990 = vmatmul.mubr.f32.gmra.mrb[0].mxu0 %v1714
    %v1991 = vpop.f32.mrb[0].mxu0
    %v1992 = vadd.f32 %v1922, %v1991
    %v1993 = vpop.f32.mrb[0].mxu0
    %1994 = vdwg.mxu0
    %1995 = vmatprep.subr.mxu0 0.0
    %1996 = vmatpush1.msra.mxu0 %v1784
    %1997 = vmatprep.subr.mxu0 0.0
    %1998 = vmatpush1.msra.mxu0 %v1785
    %1999 = vmatprep.subr.mxu0 0.0
    %2000 = vmatpush1.msra.mxu0 %v1786
    %2001 = vmatprep.subr.mxu0 0.0
    %2002 = vmatpush1.msra.mxu0 %v1787
    %2003 = vmatprep.subr.mxu0 0.0
    %2004 = vmatpush1.msra.mxu0 %v1788
    %2005 = vmatprep.subr.mxu0 0.0
    %2006 = vmatpush1.msra.mxu0 %v1789
    %2007 = vmatprep.subr.mxu0 0.0
    %2008 = vmatpush1.msra.mxu0 %v1790
    %2009 = vmatprep.subr.mxu0 0.0
    %2010 = vmatpush1.msra.mxu0 %v1791
    %2011 = vmatprep.subr.mxu0 0.0
    %2012 = vmatpush1.msra.mxu0 %v1792
    %2013 = vmatprep.subr.mxu0 0.0
    %2014 = vmatpush1.msra.mxu0 %v1793
    %2015 = vmatprep.subr.mxu0 0.0
    %2016 = vmatpush1.msra.mxu0 %v1794
    %2017 = vmatprep.subr.mxu0 0.0
    %2018 = vmatpush1.msra.mxu0 %v1795
    %2019 = vmatprep.subr.mxu0 0.0
    %2020 = vmatpush1.msra.mxu0 %v1796
    %2021 = vmatprep.subr.mxu0 0.0
    %2022 = vmatpush1.msra.mxu0 %v1797
    %2023 = vmatprep.subr.mxu0 0.0
    %2024 = vmatpush1.msra.mxu0 %v1798
    %2025 = vmatprep.subr.mxu0 0.0
    %2026 = vmatpush1.msra.mxu0 %v1799
    %2027 = vmatprep.subr.mxu0 0.0
    %2028 = vmatpush1.msra.mxu0 %v1800
    %2029 = vmatprep.subr.mxu0 0.0
    %2030 = vmatpush1.msra.mxu0 %v1801
    %2031 = vmatprep.subr.mxu0 0.0
    %2032 = vmatpush1.msra.mxu0 %v1802
    %2033 = vmatprep.subr.mxu0 0.0
    %2034 = vmatpush1.msra.mxu0 %v1803
    %2035 = vmatprep.subr.mxu0 0.0
    %2036 = vmatpush1.msra.mxu0 %v1804
    %2037 = vmatprep.subr.mxu0 0.0
    %2038 = vmatpush1.msra.mxu0 %v1805
    %2039 = vmatprep.subr.mxu0 0.0
    %2040 = vmatpush1.msra.mxu0 %v1806
    %2041 = vmatprep.subr.mxu0 0.0
    %2042 = vmatpush1.msra.mxu0 %v1807
    %2043 = vmatprep.subr.mxu0 0.0
    %2044 = vmatpush1.msra.mxu0 %v1808
    %2045 = vmatprep.subr.mxu0 0.0
    %2046 = vmatpush1.msra.mxu0 %v1809
    %2047 = vmatprep.subr.mxu0 0.0
    %2048 = vmatpush1.msra.mxu0 %v1810
    %2049 = vmatprep.subr.mxu0 0.0
    %2050 = vmatpush1.msra.mxu0 %v1811
    %2051 = vmatprep.subr.mxu0 0.0
    %2052 = vmatpush1.msra.mxu0 %v1812
    %2053 = vmatprep.subr.mxu0 0.0
    %2054 = vmatpush1.msra.mxu0 %v1813
    %2055 = vmatprep.subr.mxu0 0.0
    %2056 = vmatpush1.msra.mxu0 %v1814
    %2057 = vmatprep.subr.mxu0 0.0
    %2058 = vmatpush1.msra.mxu0 %v1815
    %2059 = vmatprep.mubr.f32.mxu0 %v1717
    %2060 = vmatmul.mubr.f32.gmra.mrb[0].mxu0 %v1716
    %v2061 = vpop.f32.mrb[0].mxu0
    %v2062 = vadd.f32 %v1992, %v2061
    %v2063 = vpop.f32.mrb[0].mxu0
    %2064 = vdwg.mxu0
    %2065 = vmatprep.subr.mxu0 0.0
    %2066 = vmatpush1.msra.mxu0 %v1816
    %2067 = vmatprep.subr.mxu0 0.0
    %2068 = vmatpush1.msra.mxu0 %v1817
    %2069 = vmatprep.subr.mxu0 0.0
    %2070 = vmatpush1.msra.mxu0 %v1818
    %2071 = vmatprep.subr.mxu0 0.0
    %2072 = vmatpush1.msra.mxu0 %v1819
    %2073 = vmatprep.subr.mxu0 0.0
    %2074 = vmatpush1.msra.mxu0 %v1820
    %2075 = vmatprep.subr.mxu0 0.0
    %2076 = vmatpush1.msra.mxu0 %v1821
    %2077 = vmatprep.subr.mxu0 0.0
    %2078 = vmatpush1.msra.mxu0 %v1822
    %2079 = vmatprep.subr.mxu0 0.0
    %2080 = vmatpush1.msra.mxu0 %v1823
    %2081 = vmatprep.subr.mxu0 0.0
    %2082 = vmatpush1.msra.mxu0 %v1824
    %2083 = vmatprep.subr.mxu0 0.0
    %2084 = vmatpush1.msra.mxu0 %v1825
    %2085 = vmatprep.subr.mxu0 0.0
    %2086 = vmatpush1.msra.mxu0 %v1826
    %2087 = vmatprep.subr.mxu0 0.0
    %2088 = vmatpush1.msra.mxu0 %v1827
    %2089 = vmatprep.subr.mxu0 0.0
    %2090 = vmatpush1.msra.mxu0 %v1828
    %2091 = vmatprep.subr.mxu0 0.0
    %2092 = vmatpush1.msra.mxu0 %v1829
    %2093 = vmatprep.subr.mxu0 0.0
    %2094 = vmatpush1.msra.mxu0 %v1830
    %2095 = vmatprep.subr.mxu0 0.0
    %2096 = vmatpush1.msra.mxu0 %v1831
    %2097 = vmatprep.subr.mxu0 0.0
    %2098 = vmatpush1.msra.mxu0 %v1832
    %2099 = vmatprep.subr.mxu0 0.0
    %2100 = vmatpush1.msra.mxu0 %v1833
    %2101 = vmatprep.subr.mxu0 0.0
    %2102 = vmatpush1.msra.mxu0 %v1834
    %2103 = vmatprep.subr.mxu0 0.0
    %2104 = vmatpush1.msra.mxu0 %v1835
    %2105 = vmatprep.subr.mxu0 0.0
    %2106 = vmatpush1.msra.mxu0 %v1836
    %2107 = vmatprep.subr.mxu0 0.0
    %2108 = vmatpush1.msra.mxu0 %v1837
    %2109 = vmatprep.subr.mxu0 0.0
    %2110 = vmatpush1.msra.mxu0 %v1838
    %2111 = vmatprep.subr.mxu0 0.0
    %2112 = vmatpush1.msra.mxu0 %v1839
    %2113 = vmatprep.subr.mxu0 0.0
    %2114 = vmatpush1.msra.mxu0 %v1840
    %2115 = vmatprep.subr.mxu0 0.0
    %2116 = vmatpush1.msra.mxu0 %v1841
    %2117 = vmatprep.subr.mxu0 0.0
    %2118 = vmatpush1.msra.mxu0 %v1842
    %2119 = vmatprep.subr.mxu0 0.0
    %2120 = vmatpush1.msra.mxu0 %v1843
    %2121 = vmatprep.subr.mxu0 0.0
    %2122 = vmatpush1.msra.mxu0 %v1844
    %2123 = vmatprep.subr.mxu0 0.0
    %2124 = vmatpush1.msra.mxu0 %v1845
    %2125 = vmatprep.subr.mxu0 0.0
    %2126 = vmatpush1.msra.mxu0 %v1846
    %2127 = vmatprep.subr.mxu0 0.0
    %2128 = vmatpush1.msra.mxu0 %v1847
    %2129 = vmatprep.mubr.f32.mxu0 %v1719
    %2130 = vmatmul.mubr.f32.gmra.mrb[0].mxu0 %v1718
    %v2131 = vpop.f32.mrb[0].mxu0
    %v2132 = vadd.f32 %v2062, %v2131
    %v2133 = vpop.f32.mrb[0].mxu0
    %2134 = vdwg.mxu0
    %2135 = vst [vmem:[%s9] sm:$0x3] %v2132
    // Predicated region
    $region70: #{conv_encoder_forward.1} parent=1 // pred_check
      _
    $region71: #{conv_encoder_forward.1} parent=1 // pred_check_branch
      %2137 = sbr.rel (0) target = $region73
    $region72: #{conv_encoder_forward.1} parent=1 // pred_region
      _
    $region73: #{conv_encoder_forward.1} parent=1 // pred_fallthru
      _
    // Predicated region
    $region74: #{conv_encoder_forward.1} parent=1 // pred_check
      _
    $region75: #{conv_encoder_forward.1} parent=1 // pred_check_branch
      %2139 = sbr.rel (0) target = $region77
    $region76: #{conv_encoder_forward.1} parent=1 // pred_region
      _
    $region77: #{conv_encoder_forward.1} parent=1 // pred_fallthru
      _
    %2140 = vsyncpa [#allocation3], 1
    %2141 = vsyncpa [#allocation5], 1
    %2142 = vsyncpa [#allocation8], 1
    %2143 = vsyncpa [#allocation11], 1
    %2144 = vsyncpa [#allocation14], 1

</llo_original>
